<compile_context>
chip_gen: v6e
topology: v6e:2x2x1
jax: 0.10.0
libtpu: 0.0.40
codegen_flags: <defaults>
</compile_context>

<pallas_src>
import math

import jax
import jax.numpy as jnp
from jax.experimental import pallas as pl
from jax.experimental.pallas import tpu as pltpu

# Accurate f32 matmuls for the plain-JAX reference / parameter glue so the
# correctness check compares against full-precision math.
jax.config.update("jax_default_matmul_precision", "highest")

BN_EPS = 1e-5        # torch.nn.BatchNorm1d default eps
GUMBEL_EPS = 1e-20   # eps used by sample_gumbel

_ON_TPU = jax.default_backend() == "tpu"


def _tpu_compiler_params(*semantics):
    # Mosaic-only knobs; skip when the default backend is not TPU (e.g. CPU
    # interpret runs) so lowering stays clean everywhere.
    if _ON_TPU:
        return pltpu.CompilerParams(dimension_semantics=semantics)
    return None


# ----------------------------------------------------------------------------
# Kernels
# ----------------------------------------------------------------------------
def _encoder(x, w1_ref, b1_ref, w2_ref, b2_ref, w3_ref, b3_ref):
    # fc1 -> ReLU -> fc2 -> ReLU -> out_fc.  Dropout has d_prob = 0.0 in this
    # setup, so it is an exact identity.
    # TODO(synk): training-mode dropout masks (d_prob > 0) are not implemented.
    h1 = jnp.maximum(
        jnp.dot(x, w1_ref[...], preferred_element_type=jnp.float32) + b1_ref[...], 0.0)
    h2 = jnp.maximum(
        jnp.dot(h1, w2_ref[...], preferred_element_type=jnp.float32) + b2_ref[...], 0.0)
    return jnp.dot(h2, w3_ref[...], preferred_element_type=jnp.float32) + b3_ref[...]


def bn_stats_kernel(x_ref, w1_ref, b1_ref, w2_ref, b2_ref, w3_ref, b3_ref,
                    sum_ref, sumsq_ref):
    """Pass 1: accumulate per-feature sum / sum-of-squares of the pre-BN
    encoder output over the whole batch (grid axis is a reduction)."""
    @pl.when(pl.program_id(0) == 0)
    def _():
        sum_ref[...] = jnp.zeros_like(sum_ref)
        sumsq_ref[...] = jnp.zeros_like(sumsq_ref)

    o = _encoder(x_ref[...], w1_ref, b1_ref, w2_ref, b2_ref, w3_ref, b3_ref)
    sum_ref[...] += jnp.sum(o, axis=0, keepdims=True)
    sumsq_ref[...] += jnp.sum(o * o, axis=0, keepdims=True)


def gmm_main_kernel(x_ref, u_ref, w1_ref, b1_ref, w2_ref, b2_ref, w3_ref,
                    b3_ref, scale_ref, shift_ref, gsum_ref, a_ref, t_ref,
                    svec_ref, bm_ref, const_ref, inv_temp_ref, out_ref):
    """Pass 2 (per batch tile): encoder -> BN (folded global scale/shift) ->
    gumbel-softmax -> per-component Gaussian log density."""
    x = x_ref[...]                                              # [BT, D]
    K = gsum_ref.shape[0]

    # ---- encoder + folded BatchNorm (global batch statistics) --------------
    o = _encoder(x, w1_ref, b1_ref, w2_ref, b2_ref, w3_ref, b3_ref)
    q = o * scale_ref[...] + shift_ref[...]                     # [BT, K]

    # ---- gumbel softmax on the lane-dense [BT, K] layout --------------------
    g = -jnp.log(-jnp.log(u_ref[...] + GUMBEL_EPS) + GUMBEL_EPS)
    y = (q + g) * inv_temp_ref[0, 0]
    # The per-row max is a constant within every categorical group of that
    # row, hence a valid stabilizer for each per-group softmax.
    y = y - jnp.max(y, axis=-1, keepdims=True)
    e = jnp.exp(y)
    # Block-diagonal 0/1 matrix broadcasts each group's sum back to its C
    # lanes -> stays lane-dense, no [BT, L, C] reshape.
    gs = jnp.dot(e, gsum_ref[...], preferred_element_type=jnp.float32)
    inv_gs = pl.reciprocal(gs, approx=False) if _ON_TPU else 1.0 / gs
    z = e * inv_gs

    # ---- per-component Gaussian log density, [BT, K] ------------------------
    # quad[b,k] = x_b^T Sinv_k x_b  via  xx[b, i*D+j] = x[b,i] * x[b,j]
    xa = jnp.dot(x, a_ref[...], preferred_element_type=jnp.float32)   # [BT, D*D]
    xt = jnp.dot(x, t_ref[...], preferred_element_type=jnp.float32)   # [BT, D*D]
    quad = jnp.dot(xa * xt, svec_ref[...], preferred_element_type=jnp.float32)
    # cross[b,k] = x_b^T Sinv_k mu_k
    cross = jnp.dot(x, bm_ref[...], preferred_element_type=jnp.float32)
    # const_ref = -0.5 * (mu^T Sinv mu + D log(2 pi) + logdet)   (per k)
    ld = const_ref[...] + cross - 0.5 * quad

    # Single [BT, 2K] output buffer: lanes [0, K) = z, [K, 2K) = log_density.
    out_ref[:, :K] = z
    out_ref[:, K:] = ld


# ----------------------------------------------------------------------------
# Wrapper
# ----------------------------------------------------------------------------
def _pick_batch_tile(B):
    # Largest power-of-two tile (8..1024 rows) dividing B; otherwise fall back
    # to a single block covering the whole batch.
    for bt in (1024, 512, 256, 128, 64, 32, 16, 8):
        if B % bt == 0:
            return bt
    return B


def gmm_forward(params, x, temp, noise_key):
    B, D = x.shape
    L = params["latent_size"]
    C = params["categorical_size"]
    K = L * C

    # --- parameter-only covariance glue (tiny [K, D, D], plain JAX) ---------
    cf = params["cov_factor"]
    Sigma = jnp.einsum("kij,klj->kil", cf, cf) + jnp.eye(D, dtype=jnp.float32)[None]
    L_Sigma = jnp.linalg.cholesky(Sigma)
    logdet = 2.0 * jnp.sum(
        jnp.log(jnp.diagonal(L_Sigma, axis1=-2, axis2=-1)), axis=-1)      # [K]
    Sigma_inv = jnp.linalg.inv(Sigma)                                     # [K, D, D]

    # Operands for the Mahalanobis-as-matmul formulation:
    #   quad = ((x @ A) * (x @ T)) @ Svec,  Svec[i*D+j, k] = Sigma_inv[k,i,j]
    Svec = jnp.transpose(Sigma_inv, (1, 2, 0)).reshape(D * D, K)          # [D*D, K]
    eye_d = jnp.eye(D, dtype=jnp.float32)
    A = jnp.repeat(eye_d, D, axis=1)       # (x @ A)[b, i*D+j] = x[b, i]
    T = jnp.tile(eye_d, (1, D))            # (x @ T)[b, i*D+j] = x[b, j]
    Bm = jnp.einsum("kij,kj->ik", Sigma_inv, params["mu"])                # [D, K]
    cmu = jnp.einsum("ki,kij,kj->k", params["mu"], Sigma_inv, params["mu"])
    const_row = (-0.5 * (cmu + D * jnp.log(2.0 * jnp.pi) + logdet)).reshape(1, K)

    # Block-diagonal group-sum matrix (groups of C lanes form one categorical).
    gidx = jnp.arange(K) // C
    gsum = (gidx[:, None] == gidx[None, :]).astype(jnp.float32)           # [K, K]

    inv_temp = jnp.full((1, 1), 1.0 / temp, dtype=jnp.float32)
    # torch.rand equivalent (uniform in [0, 1)); streamed into the kernel.
    u = jax.random.uniform(noise_key, (B, K), dtype=jnp.float32)

    BT = _pick_batch_tile(B)
    nb = B // BT

    enc_params = (params["w1"], params["b1"], params["w2"], params["b2"],
                  params["w3"], params["b3"])

    def _resident(arr):
        # Full-array block with a constant index_map: stays VMEM-resident
        # across grid steps (no re-DMA when the block index is unchanged).
        return pl.BlockSpec(arr.shape, lambda i: (0, 0))

    x_spec = pl.BlockSpec((BT, D), lambda i: (i, 0))
    enc_specs = [_resident(p) for p in enc_params]

    # ---- pass 1: global BatchNorm batch statistics --------------------------
    sum_o, sumsq_o = pl.pallas_call(
        bn_stats_kernel,
        grid=(nb,),
        in_specs=[x_spec] + enc_specs,
        out_specs=(pl.BlockSpec((1, K), lambda i: (0, 0)),
                   pl.BlockSpec((1, K), lambda i: (0, 0))),
        out_shape=(jax.ShapeDtypeStruct((1, K), jnp.float32),
                   jax.ShapeDtypeStruct((1, K), jnp.float32)),
        compiler_params=_tpu_compiler_params("arbitrary"),
    )(x, *enc_params)

    mean = sum_o / B
    var = jnp.maximum(sumsq_o / B - mean * mean, 0.0)   # biased var (BN training)
    bn_scale = params["gamma"] * jax.lax.rsqrt(var + BN_EPS)              # [1, K]
    bn_shift = params["beta"] - mean * bn_scale                           # [1, K]

    # ---- pass 2: fused encoder / BN / gumbel-softmax / log-density ----------
    mats = (bn_scale, bn_shift, gsum, A, T, Svec, Bm, const_row)
    out = pl.pallas_call(
        gmm_main_kernel,
        grid=(nb,),
        in_specs=([x_spec, pl.BlockSpec((BT, K), lambda i: (i, 0))]
                  + enc_specs
                  + [_resident(m) for m in mats]
                  + [pl.BlockSpec(memory_space=pltpu.MemorySpace.SMEM)]),
        out_specs=pl.BlockSpec((BT, 2 * K), lambda i: (i, 0)),
        out_shape=jax.ShapeDtypeStruct((B, 2 * K), jnp.float32),
        compiler_params=_tpu_compiler_params("parallel"),
    )(x, u, *enc_params, *mats, inv_temp)

    z = out[:, :K]
    log_density = out[:, K:]
    # u is returned only so callers/tests can reproduce the sampled noise.
    return z, params["mu"], Sigma, log_density, u


# ----------------------------------------------------------------------------
# Deterministic parameter init (mirrors GMM.__init__ shapes)
# ----------------------------------------------------------------------------
def init_params(key, input_size, latent_size, categorical_size, hidden):
    K = latent_size * categorical_size
    keys = jax.random.split(key, 7)

    def linear(kw, kb, fan_in, fan_out):
        bound = 1.0 / math.sqrt(fan_in)
        w = jax.random.uniform(kw, (fan_in, fan_out), minval=-bound, maxval=bound,
                               dtype=jnp.float32)
        b = jax.random.uniform(kb, (1, fan_out), minval=-bound, maxval=bound,
                               dtype=jnp.float32)
        return w, b

    w1, b1 = linear(keys[0], keys[1], input_size, hidden[0])
    w2, b2 = linear(keys[2], keys[3], hidden[0], hidden[1])
    w3, b3 = linear(keys[4], keys[5], hidden[1], K)
    mu_prior_info = jax.random.normal(keys[6], (K, input_size), dtype=jnp.float32)
    cov_factor = jnp.tile(jnp.eye(input_size, dtype=jnp.float32)[None] / input_size,
                          (K, 1, 1))
    return {
        "latent_size": latent_size,
        "categorical_size": categorical_size,
        "w1": w1, "b1": b1, "w2": w2, "b2": b2, "w3": w3, "b3": b3,
        "gamma": jnp.ones((1, K), jnp.float32),     # BatchNorm1d weight
        "beta": jnp.zeros((1, K), jnp.float32),     # BatchNorm1d bias
        "mu": mu_prior_info,                        # self.mu parameter
        "cov_factor": cov_factor,                   # self.cov_factor parameter
    }


# ----------------------------------------------------------------------------
# Pure-JAX reference (same math, no Pallas) for the correctness check.
# `u` is the uniform noise actually consumed by the kernel ([B, K]).
# ----------------------------------------------------------------------------
def reference_forward(params, x, temp, u):
    B, D = x.shape
    L, C = params["latent_size"], params["categorical_size"]
    h1 = jnp.maximum(x @ params["w1"] + params["b1"], 0.0)
    h2 = jnp.maximum(h1 @ params["w2"] + params["b2"], 0.0)
    o = h2 @ params["w3"] + params["b3"]
    mean = jnp.mean(o, axis=0, keepdims=True)
    var = jnp.mean((o - mean) ** 2, axis=0, keepdims=True)
    q = params["gamma"] * (o - mean) / jnp.sqrt(var + BN_EPS) + params["beta"]

    g = -jnp.log(-jnp.log(u + GUMBEL_EPS) + GUMBEL_EPS)
    y = ((q + g) / temp).reshape(B, L, C)
    z = jax.nn.softmax(y, axis=-1).reshape(B, L * C)

    cf = params["cov_factor"]
    Sigma = jnp.einsum("kij,klj->kil", cf, cf) + jnp.eye(D, dtype=jnp.float32)[None]
    logdet = jnp.linalg.slogdet(Sigma)[1]
    Sigma_inv = jnp.linalg.inv(Sigma)
    diff = x[:, None, :] - params["mu"][None, :, :]
    maha = jnp.einsum("bkd,kde,bke->bk", diff, Sigma_inv, diff)
    ld = -0.5 * (maha + D * jnp.log(2.0 * jnp.pi) + logdet[None, :])
    return z, params["mu"], Sigma, ld


# ----------------------------------------------------------------------------
if __name__ == "__main__":
    B = 8                 # batch
    input_size = 8        # D
    latent_size = 4
    categorical_size = 4  # K = 16
    hidden = (32, 32)
    temp = 0.5
    # d_prob = 0.0 -> Dropout is the identity (exact); acts = 'rectify' (ReLU)

    root = jax.random.PRNGKey(0)
    k_params, k_x, k_noise = jax.random.split(root, 3)
    params = init_params(k_params, input_size, latent_size, categorical_size, hidden)
    x = jax.random.normal(k_x, (B, input_size), dtype=jnp.float32)

    z, mu, Sigma, log_density, u = gmm_forward(params, x, temp, k_noise)
    jax.block_until_ready((z, mu, Sigma, log_density, u))

    K = latent_size * categorical_size
    assert z.shape == (B, K)
    assert mu.shape == (K, input_size)
    assert Sigma.shape == (K, input_size, input_size)
    assert log_density.shape == (B, K)
    assert u.shape == (B, K)
    assert bool(jnp.all((u >= 0.0) & (u < 1.0)))

    # Correctness check against a pure-JAX reference using the very same
    # gumbel uniforms consumed by the kernel.
    z_r, mu_r, Sigma_r, ld_r = reference_forward(params, x, temp, u)
    assert jnp.allclose(z, z_r, atol=2e-3, rtol=2e-3), \
        float(jnp.max(jnp.abs(z - z_r)))
    assert jnp.allclose(Sigma, Sigma_r, atol=1e-5, rtol=1e-5)
    assert jnp.allclose(log_density, ld_r, atol=2e-2, rtol=2e-3), \
        float(jnp.max(jnp.abs(log_density - ld_r)))
    # each categorical group of z is a proper distribution
    assert jnp.allclose(z.reshape(B, latent_size, categorical_size).sum(-1),
                        1.0, atol=1e-4)

    print("KERNEL_OK")
</pallas_src>

<mosaic_0001>
module attributes {stable_mosaic.version = 11 : i64} {
  func.func @bn_stats_kernel(%arg0: i32, %arg1: memref<8x8xf32, #tpu.memory_space<vmem>>, %arg2: memref<8x32xf32, #tpu.memory_space<vmem>>, %arg3: memref<1x32xf32, #tpu.memory_space<vmem>>, %arg4: memref<32x32xf32, #tpu.memory_space<vmem>>, %arg5: memref<1x32xf32, #tpu.memory_space<vmem>>, %arg6: memref<32x16xf32, #tpu.memory_space<vmem>>, %arg7: memref<1x16xf32, #tpu.memory_space<vmem>>, %arg8: memref<1x16xf32, #tpu.memory_space<vmem>>, %arg9: memref<1x16xf32, #tpu.memory_space<vmem>>) attributes {dimension_semantics = [#tpu.dimension_semantics<arbitrary>], iteration_bounds = array<i64: 1>, scalar_prefetch = 0 : i64, scratch_operands = 0 : i64, tpu.core_type = #tpu.core_type<tc>, window_params = [{transform_indices = @transform_0, window_bounds = array<i64: 8, 8>}, {pipeline_mode = #tpu.pipeline_mode<synchronous>, transform_indices = @transform_1, window_bounds = array<i64: 8, 32>}, {pipeline_mode = #tpu.pipeline_mode<synchronous>, transform_indices = @transform_2, window_bounds = array<i64: 1, 32>}, {pipeline_mode = #tpu.pipeline_mode<synchronous>, transform_indices = @transform_3, window_bounds = array<i64: 32, 32>}, {pipeline_mode = #tpu.pipeline_mode<synchronous>, transform_indices = @transform_4, window_bounds = array<i64: 1, 32>}, {pipeline_mode = #tpu.pipeline_mode<synchronous>, transform_indices = @transform_5, window_bounds = array<i64: 32, 16>}, {pipeline_mode = #tpu.pipeline_mode<synchronous>, transform_indices = @transform_6, window_bounds = array<i64: 1, 16>}, {pipeline_mode = #tpu.pipeline_mode<synchronous>, transform_indices = @transform_7, window_bounds = array<i64: 1, 16>}, {pipeline_mode = #tpu.pipeline_mode<synchronous>, transform_indices = @transform_8, window_bounds = array<i64: 1, 16>}]} {
    %c0_i32 = arith.constant 0 : i32
    %0 = arith.cmpi eq, %arg0, %c0_i32 : i32
    %1 = arith.extui %0 : i1 to i32
    %c0_i32_0 = arith.constant 0 : i32
    %2 = arith.cmpi ne, %1, %c0_i32_0 : i32
    scf.if %2 {
      %cst_28 = arith.constant 0.000000e+00 : f32
      %34 = vector.broadcast %cst_28 : f32 to vector<1x16xf32>
      %c0_29 = arith.constant 0 : index
      %c0_30 = arith.constant 0 : index
      %35 = vector.load %arg8[%c0_29, %c0_30] : memref<1x16xf32, #tpu.memory_space<vmem>>, vector<1x16xf32>
      tpu.vector_store %arg8[%c0_29, %c0_30], %34 {strides = array<i32>} : memref<1x16xf32, #tpu.memory_space<vmem>>, vector<1x16xf32>,
      %cst_31 = arith.constant 0.000000e+00 : f32
      %36 = vector.broadcast %cst_31 : f32 to vector<1x16xf32>
      %c0_32 = arith.constant 0 : index
      %c0_33 = arith.constant 0 : index
      %37 = vector.load %arg9[%c0_32, %c0_33] : memref<1x16xf32, #tpu.memory_space<vmem>>, vector<1x16xf32>
      tpu.vector_store %arg9[%c0_32, %c0_33], %36 {strides = array<i32>} : memref<1x16xf32, #tpu.memory_space<vmem>>, vector<1x16xf32>,
    } else {
    }
    %c0 = arith.constant 0 : index
    %c0_1 = arith.constant 0 : index
    %3 = vector.load %arg1[%c0, %c0_1] : memref<8x8xf32, #tpu.memory_space<vmem>>, vector<8x8xf32>
    %c0_2 = arith.constant 0 : index
    %c0_3 = arith.constant 0 : index
    %4 = vector.load %arg2[%c0_2, %c0_3] : memref<8x32xf32, #tpu.memory_space<vmem>>, vector<8x32xf32>
    %cst = arith.constant dense<0.000000e+00> : vector<8x32xf32>
    %5 = tpu.matmul %3, %4, %cst {dimension_numbers = #tpu.dot_dimension_numbers<[1], [0], [0], [1], [0, 0, 1, 1], [], []>, precision = #tpu.contract_precision<fp32>} : vector<8x8xf32>, vector<8x32xf32>, vector<8x32xf32> -> vector<8x32xf32>
    %c0_4 = arith.constant 0 : index
    %c0_5 = arith.constant 0 : index
    %6 = vector.load %arg3[%c0_4, %c0_5] : memref<1x32xf32, #tpu.memory_space<vmem>>, vector<1x32xf32>
    %7 = vector.broadcast %6 : vector<1x32xf32> to vector<8x32xf32>
    %8 = arith.addf %5, %7 : vector<8x32xf32>
    %cst_6 = arith.constant 0.000000e+00 : f32
    %9 = vector.broadcast %cst_6 : f32 to vector<8x32xf32>
    %10 = arith.maximumf %8, %9 : vector<8x32xf32>
    %c0_7 = arith.constant 0 : index
    %c0_8 = arith.constant 0 : index
    %11 = vector.load %arg4[%c0_7, %c0_8] : memref<32x32xf32, #tpu.memory_space<vmem>>, vector<32x32xf32>
    %cst_9 = arith.constant dense<0.000000e+00> : vector<8x32xf32>
    %12 = tpu.matmul %10, %11, %cst_9 {dimension_numbers = #tpu.dot_dimension_numbers<[1], [0], [0], [1], [0, 0, 1, 1], [], []>, precision = #tpu.contract_precision<fp32>} : vector<8x32xf32>, vector<32x32xf32>, vector<8x32xf32> -> vector<8x32xf32>
    %c0_10 = arith.constant 0 : index
    %c0_11 = arith.constant 0 : index
    %13 = vector.load %arg5[%c0_10, %c0_11] : memref<1x32xf32, #tpu.memory_space<vmem>>, vector<1x32xf32>
    %14 = vector.broadcast %13 : vector<1x32xf32> to vector<8x32xf32>
    %15 = arith.addf %12, %14 : vector<8x32xf32>
    %cst_12 = arith.constant 0.000000e+00 : f32
    %16 = vector.broadcast %cst_12 : f32 to vector<8x32xf32>
    %17 = arith.maximumf %15, %16 : vector<8x32xf32>
    %c0_13 = arith.constant 0 : index
    %c0_14 = arith.constant 0 : index
    %18 = vector.load %arg6[%c0_13, %c0_14] : memref<32x16xf32, #tpu.memory_space<vmem>>, vector<32x16xf32>
    %cst_15 = arith.constant dense<0.000000e+00> : vector<8x16xf32>
    %19 = tpu.matmul %17, %18, %cst_15 {dimension_numbers = #tpu.dot_dimension_numbers<[1], [0], [0], [1], [0, 0, 1, 1], [], []>, precision = #tpu.contract_precision<fp32>} : vector<8x32xf32>, vector<32x16xf32>, vector<8x16xf32> -> vector<8x16xf32>
    %c0_16 = arith.constant 0 : index
    %c0_17 = arith.constant 0 : index
    %20 = vector.load %arg7[%c0_16, %c0_17] : memref<1x16xf32, #tpu.memory_space<vmem>>, vector<1x16xf32>
    %21 = vector.broadcast %20 : vector<1x16xf32> to vector<8x16xf32>
    %22 = arith.addf %19, %21 : vector<8x16xf32>
    %c0_18 = arith.constant 0 : index
    %c0_19 = arith.constant 0 : index
    %23 = vector.load %arg8[%c0_18, %c0_19] : memref<1x16xf32, #tpu.memory_space<vmem>>, vector<1x16xf32>
    %cst_20 = arith.constant dense<0.000000e+00> : vector<16xf32>
    %24 = vector.multi_reduction <add>, %22, %cst_20 [0] : vector<8x16xf32> to vector<16xf32>
    %25 = vector.shape_cast %24 : vector<16xf32> to vector<1x16xf32>
    %26 = arith.addf %23, %25 : vector<1x16xf32>
    %c0_21 = arith.constant 0 : index
    %c0_22 = arith.constant 0 : index
    %27 = vector.load %arg8[%c0_21, %c0_22] : memref<1x16xf32, #tpu.memory_space<vmem>>, vector<1x16xf32>
    tpu.vector_store %arg8[%c0_21, %c0_22], %26 {strides = array<i32>} : memref<1x16xf32, #tpu.memory_space<vmem>>, vector<1x16xf32>,
    %c0_23 = arith.constant 0 : index
    %c0_24 = arith.constant 0 : index
    %28 = vector.load %arg9[%c0_23, %c0_24] : memref<1x16xf32, #tpu.memory_space<vmem>>, vector<1x16xf32>
    %29 = arith.mulf %22, %22 : vector<8x16xf32>
    %cst_25 = arith.constant dense<0.000000e+00> : vector<16xf32>
    %30 = vector.multi_reduction <add>, %29, %cst_25 [0] : vector<8x16xf32> to vector<16xf32>
    %31 = vector.shape_cast %30 : vector<16xf32> to vector<1x16xf32>
    %32 = arith.addf %28, %31 : vector<1x16xf32>
    %c0_26 = arith.constant 0 : index
    %c0_27 = arith.constant 0 : index
    %33 = vector.load %arg9[%c0_26, %c0_27] : memref<1x16xf32, #tpu.memory_space<vmem>>, vector<1x16xf32>
    tpu.vector_store %arg9[%c0_26, %c0_27], %32 {strides = array<i32>} : memref<1x16xf32, #tpu.memory_space<vmem>>, vector<1x16xf32>,
    return
  }
  func.func @transform_0(%arg0: i32) -> (i32, i32) {
    %c0_i32 = arith.constant 0 : i32
    %c0_i32_0 = arith.constant 0 : i32
    return %arg0, %c0_i32 : i32, i32
  }
  func.func @transform_1(%arg0: i32) -> (i32, i32) {
    %c0_i32 = arith.constant 0 : i32
    %c0_i32_0 = arith.constant 0 : i32
    %c0_i32_1 = arith.constant 0 : i32
    return %c0_i32, %c0_i32_0 : i32, i32
  }
  func.func @transform_2(%arg0: i32) -> (i32, i32) {
    %c0_i32 = arith.constant 0 : i32
    %c0_i32_0 = arith.constant 0 : i32
    %c0_i32_1 = arith.constant 0 : i32
    return %c0_i32, %c0_i32_0 : i32, i32
  }
  func.func @transform_3(%arg0: i32) -> (i32, i32) {
    %c0_i32 = arith.constant 0 : i32
    %c0_i32_0 = arith.constant 0 : i32
    %c0_i32_1 = arith.constant 0 : i32
    return %c0_i32, %c0_i32_0 : i32, i32
  }
  func.func @transform_4(%arg0: i32) -> (i32, i32) {
    %c0_i32 = arith.constant 0 : i32
    %c0_i32_0 = arith.constant 0 : i32
    %c0_i32_1 = arith.constant 0 : i32
    return %c0_i32, %c0_i32_0 : i32, i32
  }
  func.func @transform_5(%arg0: i32) -> (i32, i32) {
    %c0_i32 = arith.constant 0 : i32
    %c0_i32_0 = arith.constant 0 : i32
    %c0_i32_1 = arith.constant 0 : i32
    return %c0_i32, %c0_i32_0 : i32, i32
  }
  func.func @transform_6(%arg0: i32) -> (i32, i32) {
    %c0_i32 = arith.constant 0 : i32
    %c0_i32_0 = arith.constant 0 : i32
    %c0_i32_1 = arith.constant 0 : i32
    return %c0_i32, %c0_i32_0 : i32, i32
  }
  func.func @transform_7(%arg0: i32) -> (i32, i32) {
    %c0_i32 = arith.constant 0 : i32
    %c0_i32_0 = arith.constant 0 : i32
    %c0_i32_1 = arith.constant 0 : i32
    return %c0_i32, %c0_i32_0 : i32, i32
  }
  func.func @transform_8(%arg0: i32) -> (i32, i32) {
    %c0_i32 = arith.constant 0 : i32
    %c0_i32_0 = arith.constant 0 : i32
    %c0_i32_1 = arith.constant 0 : i32
    return %c0_i32, %c0_i32_0 : i32, i32
  }
}

</mosaic_0001>

<llo_original>
// kernel: tpu_custom_call.1
$region0: #{tpu_custom_call.1}
  #allocation0 [shape = 'u32[]', space=smem, size = 0x4, offset = 0x4, fixed_abs, tag = 'smem constant byte address 0x4 - core index']
  #allocation1 [shape = 'u32[144,128]{1,0:T(1,128)}', space=vmem, size = 0x12000, scoped, tag = 'internal scratch']
  %s0 = inlined_call_operand.vmem [shape: f32[8,8], index: 0, kind: input, shape index: {}]
  %s1 = inlined_call_operand.vmem [shape: f32[8,32], index: 1, kind: input, shape index: {}]
  %s2 = inlined_call_operand.vmem [shape: f32[1,32], index: 2, kind: input, shape index: {}]
  %s3 = inlined_call_operand.vmem [shape: f32[32,32], index: 3, kind: input, shape index: {}]
  %s4 = inlined_call_operand.vmem [shape: f32[1,32], index: 4, kind: input, shape index: {}]
  %s5 = inlined_call_operand.vmem [shape: f32[32,16], index: 5, kind: input, shape index: {}]
  %s6 = inlined_call_operand.vmem [shape: f32[1,16], index: 6, kind: input, shape index: {}]
  %s7 = inlined_call_operand.hbm [shape: f32[1,16], index: 7, kind: output, shape index: {0}]
  %s8 = inlined_call_operand.hbm [shape: f32[1,16], index: 8, kind: output, shape index: {1}]
  %9 = xla_tuple %s7, %s8
  %s10 = sld [smem:[#allocation0]]
  $region50: #{tpu_custom_call.1} parent=0
    _
  %s12 = ssub.s32 1, %s10
  %s13 = scalar_select 0, %s12, %s10
  $region1: #{tpu_custom_call.1} parent=0
    #allocation2 [shape = 'u8[512]{0}', space=vmem, size = 0x400, scoped, tag = 'output window, operand 0, single buffered']
    #allocation3 [shape = 's32[1]{0}', space=sflag, size = 0x4, scoped, tag = 'scoped memory for tpu_custom_call.1']
    #allocation4 [shape = 'u8[512]{0}', space=vmem, size = 0x400, scoped, tag = 'output window, operand 1, single buffered']
    #allocation5 [shape = 's32[1]{0}', space=sflag, size = 0x4, scoped, tag = 'scoped memory for tpu_custom_call.1']
    %14 = vsyncpa [#allocation3], 0
    %15 = vsyncpa [#allocation5], 0
    // Predicated region
    $region2: #{tpu_custom_call.1} parent=1 // pred_check
      _
    $region3: #{tpu_custom_call.1} parent=1 // pred_check_branch
      %17 = sbr.rel (0) target = $region5
    $region4: #{tpu_custom_call.1} parent=1 // pred_region
      _
    $region5: #{tpu_custom_call.1} parent=1 // pred_fallthru
      _
    // Predicated region
    $region6: #{tpu_custom_call.1} parent=1 // pred_check
      _
    $region7: #{tpu_custom_call.1} parent=1 // pred_check_branch
      %19 = sbr.rel (0) target = $region9
    $region8: #{tpu_custom_call.1} parent=1 // pred_region
      _
    $region9: #{tpu_custom_call.1} parent=1 // pred_fallthru
      _
    // Predicated region
    $region10: #{tpu_custom_call.1} parent=1 // pred_check
      _
    $region11: #{tpu_custom_call.1} parent=1 // pred_check_branch
      %21 = sbr.rel (0) target = $region13
    $region12: #{tpu_custom_call.1} parent=1 // pred_region
      _
    $region13: #{tpu_custom_call.1} parent=1 // pred_fallthru
      _
    // Predicated region
    $region14: #{tpu_custom_call.1} parent=1 // pred_check
      _
    $region15: #{tpu_custom_call.1} parent=1 // pred_check_branch
      %23 = sbr.rel (0) target = $region17
    $region16: #{tpu_custom_call.1} parent=1 // pred_region
      _
    $region17: #{tpu_custom_call.1} parent=1 // pred_fallthru
      _
    // Predicated region
    $region18: #{tpu_custom_call.1} parent=1 // pred_check
      _
    $region19: #{tpu_custom_call.1} parent=1 // pred_check_branch
      %25 = sbr.rel (0) target = $region21
    $region20: #{tpu_custom_call.1} parent=1 // pred_region
      _
    $region21: #{tpu_custom_call.1} parent=1 // pred_fallthru
      _
    // Predicated region
    $region22: #{tpu_custom_call.1} parent=1 // pred_check
      _
    $region23: #{tpu_custom_call.1} parent=1 // pred_check_branch
      %27 = sbr.rel (0) target = $region25
    $region24: #{tpu_custom_call.1} parent=1 // pred_region
      _
    $region25: #{tpu_custom_call.1} parent=1 // pred_fallthru
      _
    // Predicated region
    $region26: #{tpu_custom_call.1} parent=1 // pred_check
      _
    $region27: #{tpu_custom_call.1} parent=1 // pred_check_branch
      %29 = sbr.rel (0) target = $region29
    $region28: #{tpu_custom_call.1} parent=1 // pred_region
      _
    $region29: #{tpu_custom_call.1} parent=1 // pred_fallthru
      _
    %p30 = scmp.eq.s32.totalorder 0, 0
    // Predicated region
    $region30: #{tpu_custom_call.1} parent=1 // pred_check
      %p31 = pneg %p30
    $region31: #{tpu_custom_call.1} parent=1 // pred_check_branch
      %33 = sbr.rel (%p31) target = $region33
    $region32: #{tpu_custom_call.1} parent=1 // pred_region
      %vm34 = vcmask 122880
      %35 = vst.msk [vmem:[#allocation2] sm:$0x1] %vm34, 0.0
      %36 = vst.msk [vmem:[#allocation4] sm:$0x1] %vm34, 0.0
    $region33: #{tpu_custom_call.1} parent=1 // pred_fallthru
      _
    %v37 = vld [vmem:[%s0] sm:$0xff]
    %v38 = vld [vmem:[%s1] sm:$0xff]
    %v39 = vld [vmem:[%s2] sm:$0x1]
    %v41 = vlaneseq
    %v42 = vshrl.u32 %v41, 7
    %v43 = vsub.s32 0, %v42
    %v44 = vrot.slane %v39, %v43
    %vm46 = vcmask 64512
    %v48 = vsel %vm46, %v37, 0
    %50 = vmatprep.subr.mxu0 0.0
    %51 = vmatpush1.msra.mxu0 0.0
    %52 = vmatprep.subr.mxu0 0.0
    %53 = vmatpush1.msra.mxu0 0.0
    %54 = vmatprep.subr.mxu0 0.0
    %55 = vmatpush1.msra.mxu0 0.0
    %56 = vmatprep.subr.mxu0 0.0
    %57 = vmatpush1.msra.mxu0 0.0
    %58 = vmatprep.subr.mxu0 0.0
    %59 = vmatpush1.msra.mxu0 0.0
    %60 = vmatprep.subr.mxu0 0.0
    %61 = vmatpush1.msra.mxu0 0.0
    %62 = vmatprep.subr.mxu0 0.0
    %63 = vmatpush1.msra.mxu0 0.0
    %64 = vmatprep.subr.mxu0 0.0
    %65 = vmatpush1.msra.mxu0 0.0
    %66 = vmatprep.subr.mxu0 0.0
    %67 = vmatpush1.msra.mxu0 0.0
    %68 = vmatprep.subr.mxu0 0.0
    %69 = vmatpush1.msra.mxu0 0.0
    %70 = vmatprep.subr.mxu0 0.0
    %71 = vmatpush1.msra.mxu0 0.0
    %72 = vmatprep.subr.mxu0 0.0
    %73 = vmatpush1.msra.mxu0 0.0
    %74 = vmatprep.subr.mxu0 0.0
    %75 = vmatpush1.msra.mxu0 0.0
    %76 = vmatprep.subr.mxu0 0.0
    %77 = vmatpush1.msra.mxu0 0.0
    %78 = vmatprep.subr.mxu0 0.0
    %79 = vmatpush1.msra.mxu0 0.0
    %80 = vmatprep.subr.mxu0 0.0
    %v81 = vand.u32 %v38, 4294901760
    %82 = vmatpush1.msra.mxu0 %v81
    %83 = vmatprep.subr.mxu0 0.0
    %84 = vmatpush2.msra.mxu0 0.0
    %85 = vmatprep.subr.mxu0 0.0
    %86 = vmatpush2.msra.mxu0 0.0
    %87 = vmatprep.subr.mxu0 0.0
    %88 = vmatpush2.msra.mxu0 0.0
    %89 = vmatprep.subr.mxu0 0.0
    %90 = vmatpush2.msra.mxu0 0.0
    %91 = vmatprep.subr.mxu0 0.0
    %92 = vmatpush2.msra.mxu0 0.0
    %93 = vmatprep.subr.mxu0 0.0
    %94 = vmatpush2.msra.mxu0 0.0
    %95 = vmatprep.subr.mxu0 0.0
    %96 = vmatpush2.msra.mxu0 0.0
    %97 = vmatprep.subr.mxu0 0.0
    %98 = vmatpush2.msra.mxu0 0.0
    %99 = vmatprep.subr.mxu0 0.0
    %100 = vmatpush2.msra.mxu0 0.0
    %101 = vmatprep.subr.mxu0 0.0
    %102 = vmatpush2.msra.mxu0 0.0
    %103 = vmatprep.subr.mxu0 0.0
    %104 = vmatpush2.msra.mxu0 0.0
    %105 = vmatprep.subr.mxu0 0.0
    %106 = vmatpush2.msra.mxu0 0.0
    %107 = vmatprep.subr.mxu0 0.0
    %108 = vmatpush2.msra.mxu0 0.0
    %109 = vmatprep.subr.mxu0 0.0
    %110 = vmatpush2.msra.mxu0 0.0
    %111 = vmatprep.subr.mxu0 0.0
    %112 = vmatpush2.msra.mxu0 0.0
    %113 = vmatprep.subr.mxu0 0.0
    %114 = vmatpush2.msra.mxu0 0.0
    %115 = vmatprep.mubr.f32.mxu0 0.0
    %v116 = vand.u32 %v48, 4294901760
    %v117 = vsub.f32 %v48, %v116
    %v118 = vand.u32 %v117, 4294901760
    %v119 = vsub.f32 %v117, %v118
    %v120 = vand.u32 %v119, 4294901760
    %121 = vmatmul.mubr.f32.gmra.mxu0 %v120
    %v122 = vpop.f32.mrf.mxu0
    %v123 = vadd.f32 %v44, %v122
    %v124 = vpop.f32.mrf.mxu0
    %125 = vdwg.mxu0
    %126 = vmatprep.subr.mxu0 0.0
    %127 = vmatpush1.msra.mxu0 0.0
    %128 = vmatprep.subr.mxu0 0.0
    %129 = vmatpush1.msra.mxu0 0.0
    %130 = vmatprep.subr.mxu0 0.0
    %131 = vmatpush1.msra.mxu0 0.0
    %132 = vmatprep.subr.mxu0 0.0
    %133 = vmatpush1.msra.mxu0 0.0
    %134 = vmatprep.subr.mxu0 0.0
    %135 = vmatpush1.msra.mxu0 0.0
    %136 = vmatprep.subr.mxu0 0.0
    %137 = vmatpush1.msra.mxu0 0.0
    %138 = vmatprep.subr.mxu0 0.0
    %139 = vmatpush1.msra.mxu0 0.0
    %140 = vmatprep.subr.mxu0 0.0
    %141 = vmatpush1.msra.mxu0 0.0
    %142 = vmatprep.subr.mxu0 0.0
    %143 = vmatpush1.msra.mxu0 0.0
    %144 = vmatprep.subr.mxu0 0.0
    %145 = vmatpush1.msra.mxu0 0.0
    %146 = vmatprep.subr.mxu0 0.0
    %147 = vmatpush1.msra.mxu0 0.0
    %148 = vmatprep.subr.mxu0 0.0
    %149 = vmatpush1.msra.mxu0 0.0
    %150 = vmatprep.subr.mxu0 0.0
    %151 = vmatpush1.msra.mxu0 0.0
    %152 = vmatprep.subr.mxu0 0.0
    %153 = vmatpush1.msra.mxu0 0.0
    %154 = vmatprep.subr.mxu0 0.0
    %155 = vmatpush1.msra.mxu0 0.0
    %156 = vmatprep.subr.mxu0 0.0
    %v157 = vand.u32 %v38, 4294901760
    %v158 = vsub.f32 %v38, %v157
    %v159 = vand.u32 %v158, 4294901760
    %v160 = vsub.f32 %v158, %v159
    %v161 = vand.u32 %v160, 4294901760
    %162 = vmatpush1.msra.mxu0 %v161
    %163 = vmatprep.subr.mxu0 0.0
    %164 = vmatpush2.msra.mxu0 0.0
    %165 = vmatprep.subr.mxu0 0.0
    %166 = vmatpush2.msra.mxu0 0.0
    %167 = vmatprep.subr.mxu0 0.0
    %168 = vmatpush2.msra.mxu0 0.0
    %169 = vmatprep.subr.mxu0 0.0
    %170 = vmatpush2.msra.mxu0 0.0
    %171 = vmatprep.subr.mxu0 0.0
    %172 = vmatpush2.msra.mxu0 0.0
    %173 = vmatprep.subr.mxu0 0.0
    %174 = vmatpush2.msra.mxu0 0.0
    %175 = vmatprep.subr.mxu0 0.0
    %176 = vmatpush2.msra.mxu0 0.0
    %177 = vmatprep.subr.mxu0 0.0
    %178 = vmatpush2.msra.mxu0 0.0
    %179 = vmatprep.subr.mxu0 0.0
    %180 = vmatpush2.msra.mxu0 0.0
    %181 = vmatprep.subr.mxu0 0.0
    %182 = vmatpush2.msra.mxu0 0.0
    %183 = vmatprep.subr.mxu0 0.0
    %184 = vmatpush2.msra.mxu0 0.0
    %185 = vmatprep.subr.mxu0 0.0
    %186 = vmatpush2.msra.mxu0 0.0
    %187 = vmatprep.subr.mxu0 0.0
    %188 = vmatpush2.msra.mxu0 0.0
    %189 = vmatprep.subr.mxu0 0.0
    %190 = vmatpush2.msra.mxu0 0.0
    %191 = vmatprep.subr.mxu0 0.0
    %192 = vmatpush2.msra.mxu0 0.0
    %193 = vmatprep.subr.mxu0 0.0
    %194 = vmatpush2.msra.mxu0 0.0
    %195 = vmatprep.mubr.f32.mxu0 0.0
    %v196 = vand.u32 %v48, 4294901760
    %197 = vmatmul.mubr.f32.gmra.mxu0 %v196
    %v198 = vpop.f32.mrf.mxu0
    %v199 = vadd.f32 %v123, %v198
    %v200 = vpop.f32.mrf.mxu0
    %201 = vdwg.mxu0
    %202 = vmatprep.subr.mxu0 0.0
    %203 = vmatpush1.msra.mxu0 0.0
    %204 = vmatprep.subr.mxu0 0.0
    %205 = vmatpush1.msra.mxu0 0.0
    %206 = vmatprep.subr.mxu0 0.0
    %207 = vmatpush1.msra.mxu0 0.0
    %208 = vmatprep.subr.mxu0 0.0
    %209 = vmatpush1.msra.mxu0 0.0
    %210 = vmatprep.subr.mxu0 0.0
    %211 = vmatpush1.msra.mxu0 0.0
    %212 = vmatprep.subr.mxu0 0.0
    %213 = vmatpush1.msra.mxu0 0.0
    %214 = vmatprep.subr.mxu0 0.0
    %215 = vmatpush1.msra.mxu0 0.0
    %216 = vmatprep.subr.mxu0 0.0
    %217 = vmatpush1.msra.mxu0 0.0
    %218 = vmatprep.subr.mxu0 0.0
    %219 = vmatpush1.msra.mxu0 0.0
    %220 = vmatprep.subr.mxu0 0.0
    %221 = vmatpush1.msra.mxu0 0.0
    %222 = vmatprep.subr.mxu0 0.0
    %223 = vmatpush1.msra.mxu0 0.0
    %224 = vmatprep.subr.mxu0 0.0
    %225 = vmatpush1.msra.mxu0 0.0
    %226 = vmatprep.subr.mxu0 0.0
    %227 = vmatpush1.msra.mxu0 0.0
    %228 = vmatprep.subr.mxu0 0.0
    %229 = vmatpush1.msra.mxu0 0.0
    %230 = vmatprep.subr.mxu0 0.0
    %231 = vmatpush1.msra.mxu0 0.0
    %232 = vmatprep.subr.mxu0 0.0
    %v233 = vand.u32 %v38, 4294901760
    %v234 = vsub.f32 %v38, %v233
    %235 = vmatpush1.msra.mxu0 %v234
    %236 = vmatprep.subr.mxu0 0.0
    %237 = vmatpush2.msra.mxu0 0.0
    %238 = vmatprep.subr.mxu0 0.0
    %239 = vmatpush2.msra.mxu0 0.0
    %240 = vmatprep.subr.mxu0 0.0
    %241 = vmatpush2.msra.mxu0 0.0
    %242 = vmatprep.subr.mxu0 0.0
    %243 = vmatpush2.msra.mxu0 0.0
    %244 = vmatprep.subr.mxu0 0.0
    %245 = vmatpush2.msra.mxu0 0.0
    %246 = vmatprep.subr.mxu0 0.0
    %247 = vmatpush2.msra.mxu0 0.0
    %248 = vmatprep.subr.mxu0 0.0
    %249 = vmatpush2.msra.mxu0 0.0
    %250 = vmatprep.subr.mxu0 0.0
    %251 = vmatpush2.msra.mxu0 0.0
    %252 = vmatprep.subr.mxu0 0.0
    %253 = vmatpush2.msra.mxu0 0.0
    %254 = vmatprep.subr.mxu0 0.0
    %255 = vmatpush2.msra.mxu0 0.0
    %256 = vmatprep.subr.mxu0 0.0
    %257 = vmatpush2.msra.mxu0 0.0
    %258 = vmatprep.subr.mxu0 0.0
    %259 = vmatpush2.msra.mxu0 0.0
    %260 = vmatprep.subr.mxu0 0.0
    %261 = vmatpush2.msra.mxu0 0.0
    %262 = vmatprep.subr.mxu0 0.0
    %263 = vmatpush2.msra.mxu0 0.0
    %264 = vmatprep.subr.mxu0 0.0
    %265 = vmatpush2.msra.mxu0 0.0
    %266 = vmatprep.subr.mxu0 0.0
    %267 = vmatpush2.msra.mxu0 0.0
    %268 = vmatprep.mubr.f32.mxu0 0.0
    %v269 = vand.u32 %v48, 4294901760
    %v270 = vsub.f32 %v48, %v269
    %271 = vmatmul.mubr.f32.gmra.mxu0 %v270
    %v272 = vpop.f32.mrf.mxu0
    %v273 = vadd.f32 %v199, %v272
    %v274 = vpop.f32.mrf.mxu0
    %275 = vdwg.mxu0
    %276 = vmatprep.subr.mxu0 0.0
    %277 = vmatpush1.msra.mxu0 0.0
    %278 = vmatprep.subr.mxu0 0.0
    %279 = vmatpush1.msra.mxu0 0.0
    %280 = vmatprep.subr.mxu0 0.0
    %281 = vmatpush1.msra.mxu0 0.0
    %282 = vmatprep.subr.mxu0 0.0
    %283 = vmatpush1.msra.mxu0 0.0
    %284 = vmatprep.subr.mxu0 0.0
    %285 = vmatpush1.msra.mxu0 0.0
    %286 = vmatprep.subr.mxu0 0.0
    %287 = vmatpush1.msra.mxu0 0.0
    %288 = vmatprep.subr.mxu0 0.0
    %289 = vmatpush1.msra.mxu0 0.0
    %290 = vmatprep.subr.mxu0 0.0
    %291 = vmatpush1.msra.mxu0 0.0
    %292 = vmatprep.subr.mxu0 0.0
    %293 = vmatpush1.msra.mxu0 0.0
    %294 = vmatprep.subr.mxu0 0.0
    %295 = vmatpush1.msra.mxu0 0.0
    %296 = vmatprep.subr.mxu0 0.0
    %297 = vmatpush1.msra.mxu0 0.0
    %298 = vmatprep.subr.mxu0 0.0
    %299 = vmatpush1.msra.mxu0 0.0
    %300 = vmatprep.subr.mxu0 0.0
    %301 = vmatpush1.msra.mxu0 0.0
    %302 = vmatprep.subr.mxu0 0.0
    %303 = vmatpush1.msra.mxu0 0.0
    %304 = vmatprep.subr.mxu0 0.0
    %305 = vmatpush1.msra.mxu0 0.0
    %306 = vmatprep.subr.mxu0 0.0
    %v307 = vand.u32 %v38, 4294901760
    %308 = vmatpush1.msra.mxu0 %v307
    %309 = vmatprep.subr.mxu0 0.0
    %310 = vmatpush2.msra.mxu0 0.0
    %311 = vmatprep.subr.mxu0 0.0
    %312 = vmatpush2.msra.mxu0 0.0
    %313 = vmatprep.subr.mxu0 0.0
    %314 = vmatpush2.msra.mxu0 0.0
    %315 = vmatprep.subr.mxu0 0.0
    %316 = vmatpush2.msra.mxu0 0.0
    %317 = vmatprep.subr.mxu0 0.0
    %318 = vmatpush2.msra.mxu0 0.0
    %319 = vmatprep.subr.mxu0 0.0
    %320 = vmatpush2.msra.mxu0 0.0
    %321 = vmatprep.subr.mxu0 0.0
    %322 = vmatpush2.msra.mxu0 0.0
    %323 = vmatprep.subr.mxu0 0.0
    %324 = vmatpush2.msra.mxu0 0.0
    %325 = vmatprep.subr.mxu0 0.0
    %326 = vmatpush2.msra.mxu0 0.0
    %327 = vmatprep.subr.mxu0 0.0
    %328 = vmatpush2.msra.mxu0 0.0
    %329 = vmatprep.subr.mxu0 0.0
    %330 = vmatpush2.msra.mxu0 0.0
    %331 = vmatprep.subr.mxu0 0.0
    %332 = vmatpush2.msra.mxu0 0.0
    %333 = vmatprep.subr.mxu0 0.0
    %334 = vmatpush2.msra.mxu0 0.0
    %335 = vmatprep.subr.mxu0 0.0
    %336 = vmatpush2.msra.mxu0 0.0
    %337 = vmatprep.subr.mxu0 0.0
    %338 = vmatpush2.msra.mxu0 0.0
    %339 = vmatprep.subr.mxu0 0.0
    %340 = vmatpush2.msra.mxu0 0.0
    %341 = vmatprep.mubr.f32.mxu0 0.0
    %v342 = vand.u32 %v48, 4294901760
    %v343 = vsub.f32 %v48, %v342
    %v344 = vand.u32 %v343, 4294901760
    %345 = vmatmul.mubr.f32.gmra.mxu0 %v344
    %v346 = vpop.f32.mrf.mxu0
    %v347 = vadd.f32 %v273, %v346
    %v348 = vpop.f32.mrf.mxu0
    %349 = vdwg.mxu0
    %350 = vmatprep.subr.mxu0 0.0
    %351 = vmatpush1.msra.mxu0 0.0
    %352 = vmatprep.subr.mxu0 0.0
    %353 = vmatpush1.msra.mxu0 0.0
    %354 = vmatprep.subr.mxu0 0.0
    %355 = vmatpush1.msra.mxu0 0.0
    %356 = vmatprep.subr.mxu0 0.0
    %357 = vmatpush1.msra.mxu0 0.0
    %358 = vmatprep.subr.mxu0 0.0
    %359 = vmatpush1.msra.mxu0 0.0
    %360 = vmatprep.subr.mxu0 0.0
    %361 = vmatpush1.msra.mxu0 0.0
    %362 = vmatprep.subr.mxu0 0.0
    %363 = vmatpush1.msra.mxu0 0.0
    %364 = vmatprep.subr.mxu0 0.0
    %365 = vmatpush1.msra.mxu0 0.0
    %366 = vmatprep.subr.mxu0 0.0
    %367 = vmatpush1.msra.mxu0 0.0
    %368 = vmatprep.subr.mxu0 0.0
    %369 = vmatpush1.msra.mxu0 0.0
    %370 = vmatprep.subr.mxu0 0.0
    %371 = vmatpush1.msra.mxu0 0.0
    %372 = vmatprep.subr.mxu0 0.0
    %373 = vmatpush1.msra.mxu0 0.0
    %374 = vmatprep.subr.mxu0 0.0
    %375 = vmatpush1.msra.mxu0 0.0
    %376 = vmatprep.subr.mxu0 0.0
    %377 = vmatpush1.msra.mxu0 0.0
    %378 = vmatprep.subr.mxu0 0.0
    %379 = vmatpush1.msra.mxu0 0.0
    %380 = vmatprep.subr.mxu0 0.0
    %v381 = vand.u32 %v38, 4294901760
    %v382 = vsub.f32 %v38, %v381
    %v383 = vand.u32 %v382, 4294901760
    %384 = vmatpush1.msra.mxu0 %v383
    %385 = vmatprep.subr.mxu0 0.0
    %386 = vmatpush2.msra.mxu0 0.0
    %387 = vmatprep.subr.mxu0 0.0
    %388 = vmatpush2.msra.mxu0 0.0
    %389 = vmatprep.subr.mxu0 0.0
    %390 = vmatpush2.msra.mxu0 0.0
    %391 = vmatprep.subr.mxu0 0.0
    %392 = vmatpush2.msra.mxu0 0.0
    %393 = vmatprep.subr.mxu0 0.0
    %394 = vmatpush2.msra.mxu0 0.0
    %395 = vmatprep.subr.mxu0 0.0
    %396 = vmatpush2.msra.mxu0 0.0
    %397 = vmatprep.subr.mxu0 0.0
    %398 = vmatpush2.msra.mxu0 0.0
    %399 = vmatprep.subr.mxu0 0.0
    %400 = vmatpush2.msra.mxu0 0.0
    %401 = vmatprep.subr.mxu0 0.0
    %402 = vmatpush2.msra.mxu0 0.0
    %403 = vmatprep.subr.mxu0 0.0
    %404 = vmatpush2.msra.mxu0 0.0
    %405 = vmatprep.subr.mxu0 0.0
    %406 = vmatpush2.msra.mxu0 0.0
    %407 = vmatprep.subr.mxu0 0.0
    %408 = vmatpush2.msra.mxu0 0.0
    %409 = vmatprep.subr.mxu0 0.0
    %410 = vmatpush2.msra.mxu0 0.0
    %411 = vmatprep.subr.mxu0 0.0
    %412 = vmatpush2.msra.mxu0 0.0
    %413 = vmatprep.subr.mxu0 0.0
    %414 = vmatpush2.msra.mxu0 0.0
    %415 = vmatprep.subr.mxu0 0.0
    %416 = vmatpush2.msra.mxu0 0.0
    %417 = vmatprep.mubr.f32.mxu0 0.0
    %v418 = vand.u32 %v48, 4294901760
    %419 = vmatmul.mubr.f32.gmra.mxu0 %v418
    %v420 = vpop.f32.mrf.mxu0
    %v421 = vadd.f32 %v347, %v420
    %v422 = vpop.f32.mrf.mxu0
    %423 = vdwg.mxu0
    %424 = vmatprep.subr.mxu0 0.0
    %425 = vmatpush1.msra.mxu0 0.0
    %426 = vmatprep.subr.mxu0 0.0
    %427 = vmatpush1.msra.mxu0 0.0
    %428 = vmatprep.subr.mxu0 0.0
    %429 = vmatpush1.msra.mxu0 0.0
    %430 = vmatprep.subr.mxu0 0.0
    %431 = vmatpush1.msra.mxu0 0.0
    %432 = vmatprep.subr.mxu0 0.0
    %433 = vmatpush1.msra.mxu0 0.0
    %434 = vmatprep.subr.mxu0 0.0
    %435 = vmatpush1.msra.mxu0 0.0
    %436 = vmatprep.subr.mxu0 0.0
    %437 = vmatpush1.msra.mxu0 0.0
    %438 = vmatprep.subr.mxu0 0.0
    %439 = vmatpush1.msra.mxu0 0.0
    %440 = vmatprep.subr.mxu0 0.0
    %441 = vmatpush1.msra.mxu0 0.0
    %442 = vmatprep.subr.mxu0 0.0
    %443 = vmatpush1.msra.mxu0 0.0
    %444 = vmatprep.subr.mxu0 0.0
    %445 = vmatpush1.msra.mxu0 0.0
    %446 = vmatprep.subr.mxu0 0.0
    %447 = vmatpush1.msra.mxu0 0.0
    %448 = vmatprep.subr.mxu0 0.0
    %449 = vmatpush1.msra.mxu0 0.0
    %450 = vmatprep.subr.mxu0 0.0
    %451 = vmatpush1.msra.mxu0 0.0
    %452 = vmatprep.subr.mxu0 0.0
    %453 = vmatpush1.msra.mxu0 0.0
    %454 = vmatprep.subr.mxu0 0.0
    %v455 = vand.u32 %v38, 4294901760
    %456 = vmatpush1.msra.mxu0 %v455
    %457 = vmatprep.subr.mxu0 0.0
    %458 = vmatpush2.msra.mxu0 0.0
    %459 = vmatprep.subr.mxu0 0.0
    %460 = vmatpush2.msra.mxu0 0.0
    %461 = vmatprep.subr.mxu0 0.0
    %462 = vmatpush2.msra.mxu0 0.0
    %463 = vmatprep.subr.mxu0 0.0
    %464 = vmatpush2.msra.mxu0 0.0
    %465 = vmatprep.subr.mxu0 0.0
    %466 = vmatpush2.msra.mxu0 0.0
    %467 = vmatprep.subr.mxu0 0.0
    %468 = vmatpush2.msra.mxu0 0.0
    %469 = vmatprep.subr.mxu0 0.0
    %470 = vmatpush2.msra.mxu0 0.0
    %471 = vmatprep.subr.mxu0 0.0
    %472 = vmatpush2.msra.mxu0 0.0
    %473 = vmatprep.subr.mxu0 0.0
    %474 = vmatpush2.msra.mxu0 0.0
    %475 = vmatprep.subr.mxu0 0.0
    %476 = vmatpush2.msra.mxu0 0.0
    %477 = vmatprep.subr.mxu0 0.0
    %478 = vmatpush2.msra.mxu0 0.0
    %479 = vmatprep.subr.mxu0 0.0
    %480 = vmatpush2.msra.mxu0 0.0
    %481 = vmatprep.subr.mxu0 0.0
    %482 = vmatpush2.msra.mxu0 0.0
    %483 = vmatprep.subr.mxu0 0.0
    %484 = vmatpush2.msra.mxu0 0.0
    %485 = vmatprep.subr.mxu0 0.0
    %486 = vmatpush2.msra.mxu0 0.0
    %487 = vmatprep.subr.mxu0 0.0
    %488 = vmatpush2.msra.mxu0 0.0
    %489 = vmatprep.mubr.f32.mxu0 0.0
    %v490 = vand.u32 %v48, 4294901760
    %491 = vmatmul.mubr.f32.gmra.mxu0 %v490
    %v492 = vpop.f32.mrf.mxu0
    %v493 = vadd.f32 %v421, %v492
    %v494 = vpop.f32.mrf.mxu0
    %495 = vdwg.mxu0
    %v496 = vmax.f32 %v493, 0.0
    %v497 = vld [vmem:[%s3] sm:$0xff]
    %v498 = vld [vmem:[%s3 + $0x8] sm:$0xff]
    %v499 = vld [vmem:[%s3 + $0x10] sm:$0xff]
    %v500 = vld [vmem:[%s3 + $0x18] sm:$0xff]
    %v501 = vld [vmem:[%s4] sm:$0x1]
    %v503 = vlaneseq
    %v504 = vshrl.u32 %v503, 7
    %v505 = vsub.s32 0, %v504
    %v506 = vrot.slane %v501, %v505
    %vm508 = vcmask 261120
    %v510 = vsel %vm508, %v496, 0
    %512 = vmatprep.subr.mxu0 0.0
    %513 = vmatpush1.msra.mxu0 0.0
    %514 = vmatprep.subr.mxu0 0.0
    %515 = vmatpush1.msra.mxu0 0.0
    %516 = vmatprep.subr.mxu0 0.0
    %517 = vmatpush1.msra.mxu0 0.0
    %518 = vmatprep.subr.mxu0 0.0
    %519 = vmatpush1.msra.mxu0 0.0
    %520 = vmatprep.subr.mxu0 0.0
    %521 = vmatpush1.msra.mxu0 0.0
    %522 = vmatprep.subr.mxu0 0.0
    %523 = vmatpush1.msra.mxu0 0.0
    %524 = vmatprep.subr.mxu0 0.0
    %525 = vmatpush1.msra.mxu0 0.0
    %526 = vmatprep.subr.mxu0 0.0
    %527 = vmatpush1.msra.mxu0 0.0
    %528 = vmatprep.subr.mxu0 0.0
    %529 = vmatpush1.msra.mxu0 0.0
    %530 = vmatprep.subr.mxu0 0.0
    %531 = vmatpush1.msra.mxu0 0.0
    %532 = vmatprep.subr.mxu0 0.0
    %533 = vmatpush1.msra.mxu0 0.0
    %534 = vmatprep.subr.mxu0 0.0
    %535 = vmatpush1.msra.mxu0 0.0
    %536 = vmatprep.subr.mxu0 0.0
    %v537 = vand.u32 %v500, 4294901760
    %538 = vmatpush1.msra.mxu0 %v537
    %539 = vmatprep.subr.mxu0 0.0
    %v540 = vand.u32 %v499, 4294901760
    %541 = vmatpush1.msra.mxu0 %v540
    %542 = vmatprep.subr.mxu0 0.0
    %v543 = vand.u32 %v498, 4294901760
    %544 = vmatpush1.msra.mxu0 %v543
    %545 = vmatprep.subr.mxu0 0.0
    %v546 = vand.u32 %v497, 4294901760
    %547 = vmatpush1.msra.mxu0 %v546
    %548 = vmatprep.subr.mxu0 0.0
    %549 = vmatpush2.msra.mxu0 0.0
    %550 = vmatprep.subr.mxu0 0.0
    %551 = vmatpush2.msra.mxu0 0.0
    %552 = vmatprep.subr.mxu0 0.0
    %553 = vmatpush2.msra.mxu0 0.0
    %554 = vmatprep.subr.mxu0 0.0
    %555 = vmatpush2.msra.mxu0 0.0
    %556 = vmatprep.subr.mxu0 0.0
    %557 = vmatpush2.msra.mxu0 0.0
    %558 = vmatprep.subr.mxu0 0.0
    %559 = vmatpush2.msra.mxu0 0.0
    %560 = vmatprep.subr.mxu0 0.0
    %561 = vmatpush2.msra.mxu0 0.0
    %562 = vmatprep.subr.mxu0 0.0
    %563 = vmatpush2.msra.mxu0 0.0
    %564 = vmatprep.subr.mxu0 0.0
    %565 = vmatpush2.msra.mxu0 0.0
    %566 = vmatprep.subr.mxu0 0.0
    %567 = vmatpush2.msra.mxu0 0.0
    %568 = vmatprep.subr.mxu0 0.0
    %569 = vmatpush2.msra.mxu0 0.0
    %570 = vmatprep.subr.mxu0 0.0
    %571 = vmatpush2.msra.mxu0 0.0
    %572 = vmatprep.subr.mxu0 0.0
    %573 = vmatpush2.msra.mxu0 0.0
    %574 = vmatprep.subr.mxu0 0.0
    %575 = vmatpush2.msra.mxu0 0.0
    %576 = vmatprep.subr.mxu0 0.0
    %577 = vmatpush2.msra.mxu0 0.0
    %578 = vmatprep.subr.mxu0 0.0
    %579 = vmatpush2.msra.mxu0 0.0
    %580 = vmatprep.mubr.f32.mxu0 0.0
    %v581 = vand.u32 %v510, 4294901760
    %v582 = vsub.f32 %v510, %v581
    %v583 = vand.u32 %v582, 4294901760
    %v584 = vsub.f32 %v582, %v583
    %v585 = vand.u32 %v584, 4294901760
    %586 = vmatmul.mubr.f32.gmra.mxu0 %v585
    %v587 = vpop.f32.mrf.mxu0
    %v588 = vadd.f32 %v506, %v587
    %v589 = vpop.f32.mrf.mxu0
    %590 = vdwg.mxu0
    %591 = vmatprep.subr.mxu0 0.0
    %592 = vmatpush1.msra.mxu0 0.0
    %593 = vmatprep.subr.mxu0 0.0
    %594 = vmatpush1.msra.mxu0 0.0
    %595 = vmatprep.subr.mxu0 0.0
    %596 = vmatpush1.msra.mxu0 0.0
    %597 = vmatprep.subr.mxu0 0.0
    %598 = vmatpush1.msra.mxu0 0.0
    %599 = vmatprep.subr.mxu0 0.0
    %600 = vmatpush1.msra.mxu0 0.0
    %601 = vmatprep.subr.mxu0 0.0
    %602 = vmatpush1.msra.mxu0 0.0
    %603 = vmatprep.subr.mxu0 0.0
    %604 = vmatpush1.msra.mxu0 0.0
    %605 = vmatprep.subr.mxu0 0.0
    %606 = vmatpush1.msra.mxu0 0.0
    %607 = vmatprep.subr.mxu0 0.0
    %608 = vmatpush1.msra.mxu0 0.0
    %609 = vmatprep.subr.mxu0 0.0
    %610 = vmatpush1.msra.mxu0 0.0
    %611 = vmatprep.subr.mxu0 0.0
    %612 = vmatpush1.msra.mxu0 0.0
    %613 = vmatprep.subr.mxu0 0.0
    %614 = vmatpush1.msra.mxu0 0.0
    %615 = vmatprep.subr.mxu0 0.0
    %v616 = vand.u32 %v500, 4294901760
    %v617 = vsub.f32 %v500, %v616
    %v618 = vand.u32 %v617, 4294901760
    %v619 = vsub.f32 %v617, %v618
    %v620 = vand.u32 %v619, 4294901760
    %621 = vmatpush1.msra.mxu0 %v620
    %622 = vmatprep.subr.mxu0 0.0
    %v623 = vand.u32 %v499, 4294901760
    %v624 = vsub.f32 %v499, %v623
    %v625 = vand.u32 %v624, 4294901760
    %v626 = vsub.f32 %v624, %v625
    %v627 = vand.u32 %v626, 4294901760
    %628 = vmatpush1.msra.mxu0 %v627
    %629 = vmatprep.subr.mxu0 0.0
    %v630 = vand.u32 %v498, 4294901760
    %v631 = vsub.f32 %v498, %v630
    %v632 = vand.u32 %v631, 4294901760
    %v633 = vsub.f32 %v631, %v632
    %v634 = vand.u32 %v633, 4294901760
    %635 = vmatpush1.msra.mxu0 %v634
    %636 = vmatprep.subr.mxu0 0.0
    %v637 = vand.u32 %v497, 4294901760
    %v638 = vsub.f32 %v497, %v637
    %v639 = vand.u32 %v638, 4294901760
    %v640 = vsub.f32 %v638, %v639
    %v641 = vand.u32 %v640, 4294901760
    %642 = vmatpush1.msra.mxu0 %v641
    %643 = vmatprep.subr.mxu0 0.0
    %644 = vmatpush2.msra.mxu0 0.0
    %645 = vmatprep.subr.mxu0 0.0
    %646 = vmatpush2.msra.mxu0 0.0
    %647 = vmatprep.subr.mxu0 0.0
    %648 = vmatpush2.msra.mxu0 0.0
    %649 = vmatprep.subr.mxu0 0.0
    %650 = vmatpush2.msra.mxu0 0.0
    %651 = vmatprep.subr.mxu0 0.0
    %652 = vmatpush2.msra.mxu0 0.0
    %653 = vmatprep.subr.mxu0 0.0
    %654 = vmatpush2.msra.mxu0 0.0
    %655 = vmatprep.subr.mxu0 0.0
    %656 = vmatpush2.msra.mxu0 0.0
    %657 = vmatprep.subr.mxu0 0.0
    %658 = vmatpush2.msra.mxu0 0.0
    %659 = vmatprep.subr.mxu0 0.0
    %660 = vmatpush2.msra.mxu0 0.0
    %661 = vmatprep.subr.mxu0 0.0
    %662 = vmatpush2.msra.mxu0 0.0
    %663 = vmatprep.subr.mxu0 0.0
    %664 = vmatpush2.msra.mxu0 0.0
    %665 = vmatprep.subr.mxu0 0.0
    %666 = vmatpush2.msra.mxu0 0.0
    %667 = vmatprep.subr.mxu0 0.0
    %668 = vmatpush2.msra.mxu0 0.0
    %669 = vmatprep.subr.mxu0 0.0
    %670 = vmatpush2.msra.mxu0 0.0
    %671 = vmatprep.subr.mxu0 0.0
    %672 = vmatpush2.msra.mxu0 0.0
    %673 = vmatprep.subr.mxu0 0.0
    %674 = vmatpush2.msra.mxu0 0.0
    %675 = vmatprep.mubr.f32.mxu0 0.0
    %v676 = vand.u32 %v510, 4294901760
    %677 = vmatmul.mubr.f32.gmra.mxu0 %v676
    %v678 = vpop.f32.mrf.mxu0
    %v679 = vadd.f32 %v588, %v678
    %v680 = vpop.f32.mrf.mxu0
    %681 = vdwg.mxu0
    %682 = vmatprep.subr.mxu0 0.0
    %683 = vmatpush1.msra.mxu0 0.0
    %684 = vmatprep.subr.mxu0 0.0
    %685 = vmatpush1.msra.mxu0 0.0
    %686 = vmatprep.subr.mxu0 0.0
    %687 = vmatpush1.msra.mxu0 0.0
    %688 = vmatprep.subr.mxu0 0.0
    %689 = vmatpush1.msra.mxu0 0.0
    %690 = vmatprep.subr.mxu0 0.0
    %691 = vmatpush1.msra.mxu0 0.0
    %692 = vmatprep.subr.mxu0 0.0
    %693 = vmatpush1.msra.mxu0 0.0
    %694 = vmatprep.subr.mxu0 0.0
    %695 = vmatpush1.msra.mxu0 0.0
    %696 = vmatprep.subr.mxu0 0.0
    %697 = vmatpush1.msra.mxu0 0.0
    %698 = vmatprep.subr.mxu0 0.0
    %699 = vmatpush1.msra.mxu0 0.0
    %700 = vmatprep.subr.mxu0 0.0
    %701 = vmatpush1.msra.mxu0 0.0
    %702 = vmatprep.subr.mxu0 0.0
    %703 = vmatpush1.msra.mxu0 0.0
    %704 = vmatprep.subr.mxu0 0.0
    %705 = vmatpush1.msra.mxu0 0.0
    %706 = vmatprep.subr.mxu0 0.0
    %v707 = vand.u32 %v500, 4294901760
    %v708 = vsub.f32 %v500, %v707
    %709 = vmatpush1.msra.mxu0 %v708
    %710 = vmatprep.subr.mxu0 0.0
    %v711 = vand.u32 %v499, 4294901760
    %v712 = vsub.f32 %v499, %v711
    %713 = vmatpush1.msra.mxu0 %v712
    %714 = vmatprep.subr.mxu0 0.0
    %v715 = vand.u32 %v498, 4294901760
    %v716 = vsub.f32 %v498, %v715
    %717 = vmatpush1.msra.mxu0 %v716
    %718 = vmatprep.subr.mxu0 0.0
    %v719 = vand.u32 %v497, 4294901760
    %v720 = vsub.f32 %v497, %v719
    %721 = vmatpush1.msra.mxu0 %v720
    %722 = vmatprep.subr.mxu0 0.0
    %723 = vmatpush2.msra.mxu0 0.0
    %724 = vmatprep.subr.mxu0 0.0
    %725 = vmatpush2.msra.mxu0 0.0
    %726 = vmatprep.subr.mxu0 0.0
    %727 = vmatpush2.msra.mxu0 0.0
    %728 = vmatprep.subr.mxu0 0.0
    %729 = vmatpush2.msra.mxu0 0.0
    %730 = vmatprep.subr.mxu0 0.0
    %731 = vmatpush2.msra.mxu0 0.0
    %732 = vmatprep.subr.mxu0 0.0
    %733 = vmatpush2.msra.mxu0 0.0
    %734 = vmatprep.subr.mxu0 0.0
    %735 = vmatpush2.msra.mxu0 0.0
    %736 = vmatprep.subr.mxu0 0.0
    %737 = vmatpush2.msra.mxu0 0.0
    %738 = vmatprep.subr.mxu0 0.0
    %739 = vmatpush2.msra.mxu0 0.0
    %740 = vmatprep.subr.mxu0 0.0
    %741 = vmatpush2.msra.mxu0 0.0
    %742 = vmatprep.subr.mxu0 0.0
    %743 = vmatpush2.msra.mxu0 0.0
    %744 = vmatprep.subr.mxu0 0.0
    %745 = vmatpush2.msra.mxu0 0.0
    %746 = vmatprep.subr.mxu0 0.0
    %747 = vmatpush2.msra.mxu0 0.0
    %748 = vmatprep.subr.mxu0 0.0
    %749 = vmatpush2.msra.mxu0 0.0
    %750 = vmatprep.subr.mxu0 0.0
    %751 = vmatpush2.msra.mxu0 0.0
    %752 = vmatprep.subr.mxu0 0.0
    %753 = vmatpush2.msra.mxu0 0.0
    %754 = vmatprep.mubr.f32.mxu0 0.0
    %v755 = vand.u32 %v510, 4294901760
    %v756 = vsub.f32 %v510, %v755
    %757 = vmatmul.mubr.f32.gmra.mxu0 %v756
    %v758 = vpop.f32.mrf.mxu0
    %v759 = vadd.f32 %v679, %v758
    %v760 = vpop.f32.mrf.mxu0
    %761 = vdwg.mxu0
    %762 = vmatprep.subr.mxu0 0.0
    %763 = vmatpush1.msra.mxu0 0.0
    %764 = vmatprep.subr.mxu0 0.0
    %765 = vmatpush1.msra.mxu0 0.0
    %766 = vmatprep.subr.mxu0 0.0
    %767 = vmatpush1.msra.mxu0 0.0
    %768 = vmatprep.subr.mxu0 0.0
    %769 = vmatpush1.msra.mxu0 0.0
    %770 = vmatprep.subr.mxu0 0.0
    %771 = vmatpush1.msra.mxu0 0.0
    %772 = vmatprep.subr.mxu0 0.0
    %773 = vmatpush1.msra.mxu0 0.0
    %774 = vmatprep.subr.mxu0 0.0
    %775 = vmatpush1.msra.mxu0 0.0
    %776 = vmatprep.subr.mxu0 0.0
    %777 = vmatpush1.msra.mxu0 0.0
    %778 = vmatprep.subr.mxu0 0.0
    %779 = vmatpush1.msra.mxu0 0.0
    %780 = vmatprep.subr.mxu0 0.0
    %781 = vmatpush1.msra.mxu0 0.0
    %782 = vmatprep.subr.mxu0 0.0
    %783 = vmatpush1.msra.mxu0 0.0
    %784 = vmatprep.subr.mxu0 0.0
    %785 = vmatpush1.msra.mxu0 0.0
    %786 = vmatprep.subr.mxu0 0.0
    %v787 = vand.u32 %v500, 4294901760
    %788 = vmatpush1.msra.mxu0 %v787
    %789 = vmatprep.subr.mxu0 0.0
    %v790 = vand.u32 %v499, 4294901760
    %791 = vmatpush1.msra.mxu0 %v790
    %792 = vmatprep.subr.mxu0 0.0
    %v793 = vand.u32 %v498, 4294901760
    %794 = vmatpush1.msra.mxu0 %v793
    %795 = vmatprep.subr.mxu0 0.0
    %v796 = vand.u32 %v497, 4294901760
    %797 = vmatpush1.msra.mxu0 %v796
    %798 = vmatprep.subr.mxu0 0.0
    %799 = vmatpush2.msra.mxu0 0.0
    %800 = vmatprep.subr.mxu0 0.0
    %801 = vmatpush2.msra.mxu0 0.0
    %802 = vmatprep.subr.mxu0 0.0
    %803 = vmatpush2.msra.mxu0 0.0
    %804 = vmatprep.subr.mxu0 0.0
    %805 = vmatpush2.msra.mxu0 0.0
    %806 = vmatprep.subr.mxu0 0.0
    %807 = vmatpush2.msra.mxu0 0.0
    %808 = vmatprep.subr.mxu0 0.0
    %809 = vmatpush2.msra.mxu0 0.0
    %810 = vmatprep.subr.mxu0 0.0
    %811 = vmatpush2.msra.mxu0 0.0
    %812 = vmatprep.subr.mxu0 0.0
    %813 = vmatpush2.msra.mxu0 0.0
    %814 = vmatprep.subr.mxu0 0.0
    %815 = vmatpush2.msra.mxu0 0.0
    %816 = vmatprep.subr.mxu0 0.0
    %817 = vmatpush2.msra.mxu0 0.0
    %818 = vmatprep.subr.mxu0 0.0
    %819 = vmatpush2.msra.mxu0 0.0
    %820 = vmatprep.subr.mxu0 0.0
    %821 = vmatpush2.msra.mxu0 0.0
    %822 = vmatprep.subr.mxu0 0.0
    %823 = vmatpush2.msra.mxu0 0.0
    %824 = vmatprep.subr.mxu0 0.0
    %825 = vmatpush2.msra.mxu0 0.0
    %826 = vmatprep.subr.mxu0 0.0
    %827 = vmatpush2.msra.mxu0 0.0
    %828 = vmatprep.subr.mxu0 0.0
    %829 = vmatpush2.msra.mxu0 0.0
    %830 = vmatprep.mubr.f32.mxu0 0.0
    %v831 = vand.u32 %v510, 4294901760
    %v832 = vsub.f32 %v510, %v831
    %v833 = vand.u32 %v832, 4294901760
    %834 = vmatmul.mubr.f32.gmra.mxu0 %v833
    %v835 = vpop.f32.mrf.mxu0
    %v836 = vadd.f32 %v759, %v835
    %v837 = vpop.f32.mrf.mxu0
    %838 = vdwg.mxu0
    %839 = vmatprep.subr.mxu0 0.0
    %840 = vmatpush1.msra.mxu0 0.0
    %841 = vmatprep.subr.mxu0 0.0
    %842 = vmatpush1.msra.mxu0 0.0
    %843 = vmatprep.subr.mxu0 0.0
    %844 = vmatpush1.msra.mxu0 0.0
    %845 = vmatprep.subr.mxu0 0.0
    %846 = vmatpush1.msra.mxu0 0.0
    %847 = vmatprep.subr.mxu0 0.0
    %848 = vmatpush1.msra.mxu0 0.0
    %849 = vmatprep.subr.mxu0 0.0
    %850 = vmatpush1.msra.mxu0 0.0
    %851 = vmatprep.subr.mxu0 0.0
    %852 = vmatpush1.msra.mxu0 0.0
    %853 = vmatprep.subr.mxu0 0.0
    %854 = vmatpush1.msra.mxu0 0.0
    %855 = vmatprep.subr.mxu0 0.0
    %856 = vmatpush1.msra.mxu0 0.0
    %857 = vmatprep.subr.mxu0 0.0
    %858 = vmatpush1.msra.mxu0 0.0
    %859 = vmatprep.subr.mxu0 0.0
    %860 = vmatpush1.msra.mxu0 0.0
    %861 = vmatprep.subr.mxu0 0.0
    %862 = vmatpush1.msra.mxu0 0.0
    %863 = vmatprep.subr.mxu0 0.0
    %v864 = vand.u32 %v500, 4294901760
    %v865 = vsub.f32 %v500, %v864
    %v866 = vand.u32 %v865, 4294901760
    %867 = vmatpush1.msra.mxu0 %v866
    %868 = vmatprep.subr.mxu0 0.0
    %v869 = vand.u32 %v499, 4294901760
    %v870 = vsub.f32 %v499, %v869
    %v871 = vand.u32 %v870, 4294901760
    %872 = vmatpush1.msra.mxu0 %v871
    %873 = vmatprep.subr.mxu0 0.0
    %v874 = vand.u32 %v498, 4294901760
    %v875 = vsub.f32 %v498, %v874
    %v876 = vand.u32 %v875, 4294901760
    %877 = vmatpush1.msra.mxu0 %v876
    %878 = vmatprep.subr.mxu0 0.0
    %v879 = vand.u32 %v497, 4294901760
    %v880 = vsub.f32 %v497, %v879
    %v881 = vand.u32 %v880, 4294901760
    %882 = vmatpush1.msra.mxu0 %v881
    %883 = vmatprep.subr.mxu0 0.0
    %884 = vmatpush2.msra.mxu0 0.0
    %885 = vmatprep.subr.mxu0 0.0
    %886 = vmatpush2.msra.mxu0 0.0
    %887 = vmatprep.subr.mxu0 0.0
    %888 = vmatpush2.msra.mxu0 0.0
    %889 = vmatprep.subr.mxu0 0.0
    %890 = vmatpush2.msra.mxu0 0.0
    %891 = vmatprep.subr.mxu0 0.0
    %892 = vmatpush2.msra.mxu0 0.0
    %893 = vmatprep.subr.mxu0 0.0
    %894 = vmatpush2.msra.mxu0 0.0
    %895 = vmatprep.subr.mxu0 0.0
    %896 = vmatpush2.msra.mxu0 0.0
    %897 = vmatprep.subr.mxu0 0.0
    %898 = vmatpush2.msra.mxu0 0.0
    %899 = vmatprep.subr.mxu0 0.0
    %900 = vmatpush2.msra.mxu0 0.0
    %901 = vmatprep.subr.mxu0 0.0
    %902 = vmatpush2.msra.mxu0 0.0
    %903 = vmatprep.subr.mxu0 0.0
    %904 = vmatpush2.msra.mxu0 0.0
    %905 = vmatprep.subr.mxu0 0.0
    %906 = vmatpush2.msra.mxu0 0.0
    %907 = vmatprep.subr.mxu0 0.0
    %908 = vmatpush2.msra.mxu0 0.0
    %909 = vmatprep.subr.mxu0 0.0
    %910 = vmatpush2.msra.mxu0 0.0
    %911 = vmatprep.subr.mxu0 0.0
    %912 = vmatpush2.msra.mxu0 0.0
    %913 = vmatprep.subr.mxu0 0.0
    %914 = vmatpush2.msra.mxu0 0.0
    %915 = vmatprep.mubr.f32.mxu0 0.0
    %v916 = vand.u32 %v510, 4294901760
    %917 = vmatmul.mubr.f32.gmra.mxu0 %v916
    %v918 = vpop.f32.mrf.mxu0
    %v919 = vadd.f32 %v836, %v918
    %v920 = vpop.f32.mrf.mxu0
    %921 = vdwg.mxu0
    %922 = vmatprep.subr.mxu0 0.0
    %923 = vmatpush1.msra.mxu0 0.0
    %924 = vmatprep.subr.mxu0 0.0
    %925 = vmatpush1.msra.mxu0 0.0
    %926 = vmatprep.subr.mxu0 0.0
    %927 = vmatpush1.msra.mxu0 0.0
    %928 = vmatprep.subr.mxu0 0.0
    %929 = vmatpush1.msra.mxu0 0.0
    %930 = vmatprep.subr.mxu0 0.0
    %931 = vmatpush1.msra.mxu0 0.0
    %932 = vmatprep.subr.mxu0 0.0
    %933 = vmatpush1.msra.mxu0 0.0
    %934 = vmatprep.subr.mxu0 0.0
    %935 = vmatpush1.msra.mxu0 0.0
    %936 = vmatprep.subr.mxu0 0.0
    %937 = vmatpush1.msra.mxu0 0.0
    %938 = vmatprep.subr.mxu0 0.0
    %939 = vmatpush1.msra.mxu0 0.0
    %940 = vmatprep.subr.mxu0 0.0
    %941 = vmatpush1.msra.mxu0 0.0
    %942 = vmatprep.subr.mxu0 0.0
    %943 = vmatpush1.msra.mxu0 0.0
    %944 = vmatprep.subr.mxu0 0.0
    %945 = vmatpush1.msra.mxu0 0.0
    %946 = vmatprep.subr.mxu0 0.0
    %v947 = vand.u32 %v500, 4294901760
    %948 = vmatpush1.msra.mxu0 %v947
    %949 = vmatprep.subr.mxu0 0.0
    %v950 = vand.u32 %v499, 4294901760
    %951 = vmatpush1.msra.mxu0 %v950
    %952 = vmatprep.subr.mxu0 0.0
    %v953 = vand.u32 %v498, 4294901760
    %954 = vmatpush1.msra.mxu0 %v953
    %955 = vmatprep.subr.mxu0 0.0
    %v956 = vand.u32 %v497, 4294901760
    %957 = vmatpush1.msra.mxu0 %v956
    %958 = vmatprep.subr.mxu0 0.0
    %959 = vmatpush2.msra.mxu0 0.0
    %960 = vmatprep.subr.mxu0 0.0
    %961 = vmatpush2.msra.mxu0 0.0
    %962 = vmatprep.subr.mxu0 0.0
    %963 = vmatpush2.msra.mxu0 0.0
    %964 = vmatprep.subr.mxu0 0.0
    %965 = vmatpush2.msra.mxu0 0.0
    %966 = vmatprep.subr.mxu0 0.0
    %967 = vmatpush2.msra.mxu0 0.0
    %968 = vmatprep.subr.mxu0 0.0
    %969 = vmatpush2.msra.mxu0 0.0
    %970 = vmatprep.subr.mxu0 0.0
    %971 = vmatpush2.msra.mxu0 0.0
    %972 = vmatprep.subr.mxu0 0.0
    %973 = vmatpush2.msra.mxu0 0.0
    %974 = vmatprep.subr.mxu0 0.0
    %975 = vmatpush2.msra.mxu0 0.0
    %976 = vmatprep.subr.mxu0 0.0
    %977 = vmatpush2.msra.mxu0 0.0
    %978 = vmatprep.subr.mxu0 0.0
    %979 = vmatpush2.msra.mxu0 0.0
    %980 = vmatprep.subr.mxu0 0.0
    %981 = vmatpush2.msra.mxu0 0.0
    %982 = vmatprep.subr.mxu0 0.0
    %983 = vmatpush2.msra.mxu0 0.0
    %984 = vmatprep.subr.mxu0 0.0
    %985 = vmatpush2.msra.mxu0 0.0
    %986 = vmatprep.subr.mxu0 0.0
    %987 = vmatpush2.msra.mxu0 0.0
    %988 = vmatprep.subr.mxu0 0.0
    %989 = vmatpush2.msra.mxu0 0.0
    %990 = vmatprep.mubr.f32.mxu0 0.0
    %v991 = vand.u32 %v510, 4294901760
    %992 = vmatmul.mubr.f32.gmra.mxu0 %v991
    %v993 = vpop.f32.mrf.mxu0
    %v994 = vadd.f32 %v919, %v993
    %v995 = vpop.f32.mrf.mxu0
    %996 = vdwg.mxu0
    %v997 = vmax.f32 %v994, 0.0
    %v998 = vld [vmem:[%s5] sm:$0xff]
    %v999 = vld [vmem:[%s5 + $0x8] sm:$0xff]
    %v1000 = vld [vmem:[%s5 + $0x10] sm:$0xff]
    %v1001 = vld [vmem:[%s5 + $0x18] sm:$0xff]
    %v1002 = vld [vmem:[%s6] sm:$0x1]
    %v1004 = vlaneseq
    %v1005 = vshrl.u32 %v1004, 7
    %v1006 = vsub.s32 0, %v1005
    %v1007 = vrot.slane %v1002, %v1006
    %v1010 = vsel %vm508, %v997, 0
    %1012 = vmatprep.subr.mxu0 0.0
    %1013 = vmatpush1.msra.mxu0 0.0
    %1014 = vmatprep.subr.mxu0 0.0
    %1015 = vmatpush1.msra.mxu0 0.0
    %1016 = vmatprep.subr.mxu0 0.0
    %1017 = vmatpush1.msra.mxu0 0.0
    %1018 = vmatprep.subr.mxu0 0.0
    %1019 = vmatpush1.msra.mxu0 0.0
    %1020 = vmatprep.subr.mxu0 0.0
    %1021 = vmatpush1.msra.mxu0 0.0
    %1022 = vmatprep.subr.mxu0 0.0
    %1023 = vmatpush1.msra.mxu0 0.0
    %1024 = vmatprep.subr.mxu0 0.0
    %1025 = vmatpush1.msra.mxu0 0.0
    %1026 = vmatprep.subr.mxu0 0.0
    %1027 = vmatpush1.msra.mxu0 0.0
    %1028 = vmatprep.subr.mxu0 0.0
    %1029 = vmatpush1.msra.mxu0 0.0
    %1030 = vmatprep.subr.mxu0 0.0
    %1031 = vmatpush1.msra.mxu0 0.0
    %1032 = vmatprep.subr.mxu0 0.0
    %1033 = vmatpush1.msra.mxu0 0.0
    %1034 = vmatprep.subr.mxu0 0.0
    %1035 = vmatpush1.msra.mxu0 0.0
    %1036 = vmatprep.subr.mxu0 0.0
    %v1037 = vand.u32 %v1001, 4294901760
    %1038 = vmatpush1.msra.mxu0 %v1037
    %1039 = vmatprep.subr.mxu0 0.0
    %v1040 = vand.u32 %v1000, 4294901760
    %1041 = vmatpush1.msra.mxu0 %v1040
    %1042 = vmatprep.subr.mxu0 0.0
    %v1043 = vand.u32 %v999, 4294901760
    %1044 = vmatpush1.msra.mxu0 %v1043
    %1045 = vmatprep.subr.mxu0 0.0
    %v1046 = vand.u32 %v998, 4294901760
    %1047 = vmatpush1.msra.mxu0 %v1046
    %1048 = vmatprep.subr.mxu0 0.0
    %1049 = vmatpush2.msra.mxu0 0.0
    %1050 = vmatprep.subr.mxu0 0.0
    %1051 = vmatpush2.msra.mxu0 0.0
    %1052 = vmatprep.subr.mxu0 0.0
    %1053 = vmatpush2.msra.mxu0 0.0
    %1054 = vmatprep.subr.mxu0 0.0
    %1055 = vmatpush2.msra.mxu0 0.0
    %1056 = vmatprep.subr.mxu0 0.0
    %1057 = vmatpush2.msra.mxu0 0.0
    %1058 = vmatprep.subr.mxu0 0.0
    %1059 = vmatpush2.msra.mxu0 0.0
    %1060 = vmatprep.subr.mxu0 0.0
    %1061 = vmatpush2.msra.mxu0 0.0
    %1062 = vmatprep.subr.mxu0 0.0
    %1063 = vmatpush2.msra.mxu0 0.0
    %1064 = vmatprep.subr.mxu0 0.0
    %1065 = vmatpush2.msra.mxu0 0.0
    %1066 = vmatprep.subr.mxu0 0.0
    %1067 = vmatpush2.msra.mxu0 0.0
    %1068 = vmatprep.subr.mxu0 0.0
    %1069 = vmatpush2.msra.mxu0 0.0
    %1070 = vmatprep.subr.mxu0 0.0
    %1071 = vmatpush2.msra.mxu0 0.0
    %1072 = vmatprep.subr.mxu0 0.0
    %1073 = vmatpush2.msra.mxu0 0.0
    %1074 = vmatprep.subr.mxu0 0.0
    %1075 = vmatpush2.msra.mxu0 0.0
    %1076 = vmatprep.subr.mxu0 0.0
    %1077 = vmatpush2.msra.mxu0 0.0
    %1078 = vmatprep.subr.mxu0 0.0
    %1079 = vmatpush2.msra.mxu0 0.0
    %1080 = vmatprep.mubr.f32.mxu0 0.0
    %v1081 = vand.u32 %v1010, 4294901760
    %v1082 = vsub.f32 %v1010, %v1081
    %v1083 = vand.u32 %v1082, 4294901760
    %v1084 = vsub.f32 %v1082, %v1083
    %v1085 = vand.u32 %v1084, 4294901760
    %1086 = vmatmul.mubr.f32.gmra.mxu0 %v1085
    %v1087 = vpop.f32.mrf.mxu0
    %v1088 = vadd.f32 %v1007, %v1087
    %v1089 = vpop.f32.mrf.mxu0
    %1090 = vdwg.mxu0
    %1091 = vmatprep.subr.mxu0 0.0
    %1092 = vmatpush1.msra.mxu0 0.0
    %1093 = vmatprep.subr.mxu0 0.0
    %1094 = vmatpush1.msra.mxu0 0.0
    %1095 = vmatprep.subr.mxu0 0.0
    %1096 = vmatpush1.msra.mxu0 0.0
    %1097 = vmatprep.subr.mxu0 0.0
    %1098 = vmatpush1.msra.mxu0 0.0
    %1099 = vmatprep.subr.mxu0 0.0
    %1100 = vmatpush1.msra.mxu0 0.0
    %1101 = vmatprep.subr.mxu0 0.0
    %1102 = vmatpush1.msra.mxu0 0.0
    %1103 = vmatprep.subr.mxu0 0.0
    %1104 = vmatpush1.msra.mxu0 0.0
    %1105 = vmatprep.subr.mxu0 0.0
    %1106 = vmatpush1.msra.mxu0 0.0
    %1107 = vmatprep.subr.mxu0 0.0
    %1108 = vmatpush1.msra.mxu0 0.0
    %1109 = vmatprep.subr.mxu0 0.0
    %1110 = vmatpush1.msra.mxu0 0.0
    %1111 = vmatprep.subr.mxu0 0.0
    %1112 = vmatpush1.msra.mxu0 0.0
    %1113 = vmatprep.subr.mxu0 0.0
    %1114 = vmatpush1.msra.mxu0 0.0
    %1115 = vmatprep.subr.mxu0 0.0
    %v1116 = vand.u32 %v1001, 4294901760
    %v1117 = vsub.f32 %v1001, %v1116
    %v1118 = vand.u32 %v1117, 4294901760
    %v1119 = vsub.f32 %v1117, %v1118
    %v1120 = vand.u32 %v1119, 4294901760
    %1121 = vmatpush1.msra.mxu0 %v1120
    %1122 = vmatprep.subr.mxu0 0.0
    %v1123 = vand.u32 %v1000, 4294901760
    %v1124 = vsub.f32 %v1000, %v1123
    %v1125 = vand.u32 %v1124, 4294901760
    %v1126 = vsub.f32 %v1124, %v1125
    %v1127 = vand.u32 %v1126, 4294901760
    %1128 = vmatpush1.msra.mxu0 %v1127
    %1129 = vmatprep.subr.mxu0 0.0
    %v1130 = vand.u32 %v999, 4294901760
    %v1131 = vsub.f32 %v999, %v1130
    %v1132 = vand.u32 %v1131, 4294901760
    %v1133 = vsub.f32 %v1131, %v1132
    %v1134 = vand.u32 %v1133, 4294901760
    %1135 = vmatpush1.msra.mxu0 %v1134
    %1136 = vmatprep.subr.mxu0 0.0
    %v1137 = vand.u32 %v998, 4294901760
    %v1138 = vsub.f32 %v998, %v1137
    %v1139 = vand.u32 %v1138, 4294901760
    %v1140 = vsub.f32 %v1138, %v1139
    %v1141 = vand.u32 %v1140, 4294901760
    %1142 = vmatpush1.msra.mxu0 %v1141
    %1143 = vmatprep.subr.mxu0 0.0
    %1144 = vmatpush2.msra.mxu0 0.0
    %1145 = vmatprep.subr.mxu0 0.0
    %1146 = vmatpush2.msra.mxu0 0.0
    %1147 = vmatprep.subr.mxu0 0.0
    %1148 = vmatpush2.msra.mxu0 0.0
    %1149 = vmatprep.subr.mxu0 0.0
    %1150 = vmatpush2.msra.mxu0 0.0
    %1151 = vmatprep.subr.mxu0 0.0
    %1152 = vmatpush2.msra.mxu0 0.0
    %1153 = vmatprep.subr.mxu0 0.0
    %1154 = vmatpush2.msra.mxu0 0.0
    %1155 = vmatprep.subr.mxu0 0.0
    %1156 = vmatpush2.msra.mxu0 0.0
    %1157 = vmatprep.subr.mxu0 0.0
    %1158 = vmatpush2.msra.mxu0 0.0
    %1159 = vmatprep.subr.mxu0 0.0
    %1160 = vmatpush2.msra.mxu0 0.0
    %1161 = vmatprep.subr.mxu0 0.0
    %1162 = vmatpush2.msra.mxu0 0.0
    %1163 = vmatprep.subr.mxu0 0.0
    %1164 = vmatpush2.msra.mxu0 0.0
    %1165 = vmatprep.subr.mxu0 0.0
    %1166 = vmatpush2.msra.mxu0 0.0
    %1167 = vmatprep.subr.mxu0 0.0
    %1168 = vmatpush2.msra.mxu0 0.0
    %1169 = vmatprep.subr.mxu0 0.0
    %1170 = vmatpush2.msra.mxu0 0.0
    %1171 = vmatprep.subr.mxu0 0.0
    %1172 = vmatpush2.msra.mxu0 0.0
    %1173 = vmatprep.subr.mxu0 0.0
    %1174 = vmatpush2.msra.mxu0 0.0
    %1175 = vmatprep.mubr.f32.mxu0 0.0
    %v1176 = vand.u32 %v1010, 4294901760
    %1177 = vmatmul.mubr.f32.gmra.mxu0 %v1176
    %v1178 = vpop.f32.mrf.mxu0
    %v1179 = vadd.f32 %v1088, %v1178
    %v1180 = vpop.f32.mrf.mxu0
    %1181 = vdwg.mxu0
    %1182 = vmatprep.subr.mxu0 0.0
    %1183 = vmatpush1.msra.mxu0 0.0
    %1184 = vmatprep.subr.mxu0 0.0
    %1185 = vmatpush1.msra.mxu0 0.0
    %1186 = vmatprep.subr.mxu0 0.0
    %1187 = vmatpush1.msra.mxu0 0.0
    %1188 = vmatprep.subr.mxu0 0.0
    %1189 = vmatpush1.msra.mxu0 0.0
    %1190 = vmatprep.subr.mxu0 0.0
    %1191 = vmatpush1.msra.mxu0 0.0
    %1192 = vmatprep.subr.mxu0 0.0
    %1193 = vmatpush1.msra.mxu0 0.0
    %1194 = vmatprep.subr.mxu0 0.0
    %1195 = vmatpush1.msra.mxu0 0.0
    %1196 = vmatprep.subr.mxu0 0.0
    %1197 = vmatpush1.msra.mxu0 0.0
    %1198 = vmatprep.subr.mxu0 0.0
    %1199 = vmatpush1.msra.mxu0 0.0
    %1200 = vmatprep.subr.mxu0 0.0
    %1201 = vmatpush1.msra.mxu0 0.0
    %1202 = vmatprep.subr.mxu0 0.0
    %1203 = vmatpush1.msra.mxu0 0.0
    %1204 = vmatprep.subr.mxu0 0.0
    %1205 = vmatpush1.msra.mxu0 0.0
    %1206 = vmatprep.subr.mxu0 0.0
    %v1207 = vand.u32 %v1001, 4294901760
    %v1208 = vsub.f32 %v1001, %v1207
    %1209 = vmatpush1.msra.mxu0 %v1208
    %1210 = vmatprep.subr.mxu0 0.0
    %v1211 = vand.u32 %v1000, 4294901760
    %v1212 = vsub.f32 %v1000, %v1211
    %1213 = vmatpush1.msra.mxu0 %v1212
    %1214 = vmatprep.subr.mxu0 0.0
    %v1215 = vand.u32 %v999, 4294901760
    %v1216 = vsub.f32 %v999, %v1215
    %1217 = vmatpush1.msra.mxu0 %v1216
    %1218 = vmatprep.subr.mxu0 0.0
    %v1219 = vand.u32 %v998, 4294901760
    %v1220 = vsub.f32 %v998, %v1219
    %1221 = vmatpush1.msra.mxu0 %v1220
    %1222 = vmatprep.subr.mxu0 0.0
    %1223 = vmatpush2.msra.mxu0 0.0
    %1224 = vmatprep.subr.mxu0 0.0
    %1225 = vmatpush2.msra.mxu0 0.0
    %1226 = vmatprep.subr.mxu0 0.0
    %1227 = vmatpush2.msra.mxu0 0.0
    %1228 = vmatprep.subr.mxu0 0.0
    %1229 = vmatpush2.msra.mxu0 0.0
    %1230 = vmatprep.subr.mxu0 0.0
    %1231 = vmatpush2.msra.mxu0 0.0
    %1232 = vmatprep.subr.mxu0 0.0
    %1233 = vmatpush2.msra.mxu0 0.0
    %1234 = vmatprep.subr.mxu0 0.0
    %1235 = vmatpush2.msra.mxu0 0.0
    %1236 = vmatprep.subr.mxu0 0.0
    %1237 = vmatpush2.msra.mxu0 0.0
    %1238 = vmatprep.subr.mxu0 0.0
    %1239 = vmatpush2.msra.mxu0 0.0
    %1240 = vmatprep.subr.mxu0 0.0
    %1241 = vmatpush2.msra.mxu0 0.0
    %1242 = vmatprep.subr.mxu0 0.0
    %1243 = vmatpush2.msra.mxu0 0.0
    %1244 = vmatprep.subr.mxu0 0.0
    %1245 = vmatpush2.msra.mxu0 0.0
    %1246 = vmatprep.subr.mxu0 0.0
    %1247 = vmatpush2.msra.mxu0 0.0
    %1248 = vmatprep.subr.mxu0 0.0
    %1249 = vmatpush2.msra.mxu0 0.0
    %1250 = vmatprep.subr.mxu0 0.0
    %1251 = vmatpush2.msra.mxu0 0.0
    %1252 = vmatprep.subr.mxu0 0.0
    %1253 = vmatpush2.msra.mxu0 0.0
    %1254 = vmatprep.mubr.f32.mxu0 0.0
    %v1255 = vand.u32 %v1010, 4294901760
    %v1256 = vsub.f32 %v1010, %v1255
    %1257 = vmatmul.mubr.f32.gmra.mxu0 %v1256
    %v1258 = vpop.f32.mrf.mxu0
    %v1259 = vadd.f32 %v1179, %v1258
    %v1260 = vpop.f32.mrf.mxu0
    %1261 = vdwg.mxu0
    %1262 = vmatprep.subr.mxu0 0.0
    %1263 = vmatpush1.msra.mxu0 0.0
    %1264 = vmatprep.subr.mxu0 0.0
    %1265 = vmatpush1.msra.mxu0 0.0
    %1266 = vmatprep.subr.mxu0 0.0
    %1267 = vmatpush1.msra.mxu0 0.0
    %1268 = vmatprep.subr.mxu0 0.0
    %1269 = vmatpush1.msra.mxu0 0.0
    %1270 = vmatprep.subr.mxu0 0.0
    %1271 = vmatpush1.msra.mxu0 0.0
    %1272 = vmatprep.subr.mxu0 0.0
    %1273 = vmatpush1.msra.mxu0 0.0
    %1274 = vmatprep.subr.mxu0 0.0
    %1275 = vmatpush1.msra.mxu0 0.0
    %1276 = vmatprep.subr.mxu0 0.0
    %1277 = vmatpush1.msra.mxu0 0.0
    %1278 = vmatprep.subr.mxu0 0.0
    %1279 = vmatpush1.msra.mxu0 0.0
    %1280 = vmatprep.subr.mxu0 0.0
    %1281 = vmatpush1.msra.mxu0 0.0
    %1282 = vmatprep.subr.mxu0 0.0
    %1283 = vmatpush1.msra.mxu0 0.0
    %1284 = vmatprep.subr.mxu0 0.0
    %1285 = vmatpush1.msra.mxu0 0.0
    %1286 = vmatprep.subr.mxu0 0.0
    %v1287 = vand.u32 %v1001, 4294901760
    %1288 = vmatpush1.msra.mxu0 %v1287
    %1289 = vmatprep.subr.mxu0 0.0
    %v1290 = vand.u32 %v1000, 4294901760
    %1291 = vmatpush1.msra.mxu0 %v1290
    %1292 = vmatprep.subr.mxu0 0.0
    %v1293 = vand.u32 %v999, 4294901760
    %1294 = vmatpush1.msra.mxu0 %v1293
    %1295 = vmatprep.subr.mxu0 0.0
    %v1296 = vand.u32 %v998, 4294901760
    %1297 = vmatpush1.msra.mxu0 %v1296
    %1298 = vmatprep.subr.mxu0 0.0
    %1299 = vmatpush2.msra.mxu0 0.0
    %1300 = vmatprep.subr.mxu0 0.0
    %1301 = vmatpush2.msra.mxu0 0.0
    %1302 = vmatprep.subr.mxu0 0.0
    %1303 = vmatpush2.msra.mxu0 0.0
    %1304 = vmatprep.subr.mxu0 0.0
    %1305 = vmatpush2.msra.mxu0 0.0
    %1306 = vmatprep.subr.mxu0 0.0
    %1307 = vmatpush2.msra.mxu0 0.0
    %1308 = vmatprep.subr.mxu0 0.0
    %1309 = vmatpush2.msra.mxu0 0.0
    %1310 = vmatprep.subr.mxu0 0.0
    %1311 = vmatpush2.msra.mxu0 0.0
    %1312 = vmatprep.subr.mxu0 0.0
    %1313 = vmatpush2.msra.mxu0 0.0
    %1314 = vmatprep.subr.mxu0 0.0
    %1315 = vmatpush2.msra.mxu0 0.0
    %1316 = vmatprep.subr.mxu0 0.0
    %1317 = vmatpush2.msra.mxu0 0.0
    %1318 = vmatprep.subr.mxu0 0.0
    %1319 = vmatpush2.msra.mxu0 0.0
    %1320 = vmatprep.subr.mxu0 0.0
    %1321 = vmatpush2.msra.mxu0 0.0
    %1322 = vmatprep.subr.mxu0 0.0
    %1323 = vmatpush2.msra.mxu0 0.0
    %1324 = vmatprep.subr.mxu0 0.0
    %1325 = vmatpush2.msra.mxu0 0.0
    %1326 = vmatprep.subr.mxu0 0.0
    %1327 = vmatpush2.msra.mxu0 0.0
    %1328 = vmatprep.subr.mxu0 0.0
    %1329 = vmatpush2.msra.mxu0 0.0
    %1330 = vmatprep.mubr.f32.mxu0 0.0
    %v1331 = vand.u32 %v1010, 4294901760
    %v1332 = vsub.f32 %v1010, %v1331
    %v1333 = vand.u32 %v1332, 4294901760
    %1334 = vmatmul.mubr.f32.gmra.mxu0 %v1333
    %v1335 = vpop.f32.mrf.mxu0
    %v1336 = vadd.f32 %v1259, %v1335
    %v1337 = vpop.f32.mrf.mxu0
    %1338 = vdwg.mxu0
    %1339 = vmatprep.subr.mxu0 0.0
    %1340 = vmatpush1.msra.mxu0 0.0
    %1341 = vmatprep.subr.mxu0 0.0
    %1342 = vmatpush1.msra.mxu0 0.0
    %1343 = vmatprep.subr.mxu0 0.0
    %1344 = vmatpush1.msra.mxu0 0.0
    %1345 = vmatprep.subr.mxu0 0.0
    %1346 = vmatpush1.msra.mxu0 0.0
    %1347 = vmatprep.subr.mxu0 0.0
    %1348 = vmatpush1.msra.mxu0 0.0
    %1349 = vmatprep.subr.mxu0 0.0
    %1350 = vmatpush1.msra.mxu0 0.0
    %1351 = vmatprep.subr.mxu0 0.0
    %1352 = vmatpush1.msra.mxu0 0.0
    %1353 = vmatprep.subr.mxu0 0.0
    %1354 = vmatpush1.msra.mxu0 0.0
    %1355 = vmatprep.subr.mxu0 0.0
    %1356 = vmatpush1.msra.mxu0 0.0
    %1357 = vmatprep.subr.mxu0 0.0
    %1358 = vmatpush1.msra.mxu0 0.0
    %1359 = vmatprep.subr.mxu0 0.0
    %1360 = vmatpush1.msra.mxu0 0.0
    %1361 = vmatprep.subr.mxu0 0.0
    %1362 = vmatpush1.msra.mxu0 0.0
    %1363 = vmatprep.subr.mxu0 0.0
    %v1364 = vand.u32 %v1001, 4294901760
    %v1365 = vsub.f32 %v1001, %v1364
    %v1366 = vand.u32 %v1365, 4294901760
    %1367 = vmatpush1.msra.mxu0 %v1366
    %1368 = vmatprep.subr.mxu0 0.0
    %v1369 = vand.u32 %v1000, 4294901760
    %v1370 = vsub.f32 %v1000, %v1369
    %v1371 = vand.u32 %v1370, 4294901760
    %1372 = vmatpush1.msra.mxu0 %v1371
    %1373 = vmatprep.subr.mxu0 0.0
    %v1374 = vand.u32 %v999, 4294901760
    %v1375 = vsub.f32 %v999, %v1374
    %v1376 = vand.u32 %v1375, 4294901760
    %1377 = vmatpush1.msra.mxu0 %v1376
    %1378 = vmatprep.subr.mxu0 0.0
    %v1379 = vand.u32 %v998, 4294901760
    %v1380 = vsub.f32 %v998, %v1379
    %v1381 = vand.u32 %v1380, 4294901760
    %1382 = vmatpush1.msra.mxu0 %v1381
    %1383 = vmatprep.subr.mxu0 0.0
    %1384 = vmatpush2.msra.mxu0 0.0
    %1385 = vmatprep.subr.mxu0 0.0
    %1386 = vmatpush2.msra.mxu0 0.0
    %1387 = vmatprep.subr.mxu0 0.0
    %1388 = vmatpush2.msra.mxu0 0.0
    %1389 = vmatprep.subr.mxu0 0.0
    %1390 = vmatpush2.msra.mxu0 0.0
    %1391 = vmatprep.subr.mxu0 0.0
    %1392 = vmatpush2.msra.mxu0 0.0
    %1393 = vmatprep.subr.mxu0 0.0
    %1394 = vmatpush2.msra.mxu0 0.0
    %1395 = vmatprep.subr.mxu0 0.0
    %1396 = vmatpush2.msra.mxu0 0.0
    %1397 = vmatprep.subr.mxu0 0.0
    %1398 = vmatpush2.msra.mxu0 0.0
    %1399 = vmatprep.subr.mxu0 0.0
    %1400 = vmatpush2.msra.mxu0 0.0
    %1401 = vmatprep.subr.mxu0 0.0
    %1402 = vmatpush2.msra.mxu0 0.0
    %1403 = vmatprep.subr.mxu0 0.0
    %1404 = vmatpush2.msra.mxu0 0.0
    %1405 = vmatprep.subr.mxu0 0.0
    %1406 = vmatpush2.msra.mxu0 0.0
    %1407 = vmatprep.subr.mxu0 0.0
    %1408 = vmatpush2.msra.mxu0 0.0
    %1409 = vmatprep.subr.mxu0 0.0
    %1410 = vmatpush2.msra.mxu0 0.0
    %1411 = vmatprep.subr.mxu0 0.0
    %1412 = vmatpush2.msra.mxu0 0.0
    %1413 = vmatprep.subr.mxu0 0.0
    %1414 = vmatpush2.msra.mxu0 0.0
    %1415 = vmatprep.mubr.f32.mxu0 0.0
    %v1416 = vand.u32 %v1010, 4294901760
    %1417 = vmatmul.mubr.f32.gmra.mxu0 %v1416
    %v1418 = vpop.f32.mrf.mxu0
    %v1419 = vadd.f32 %v1336, %v1418
    %v1420 = vpop.f32.mrf.mxu0
    %1421 = vdwg.mxu0
    %1422 = vmatprep.subr.mxu0 0.0
    %1423 = vmatpush1.msra.mxu0 0.0
    %1424 = vmatprep.subr.mxu0 0.0
    %1425 = vmatpush1.msra.mxu0 0.0
    %1426 = vmatprep.subr.mxu0 0.0
    %1427 = vmatpush1.msra.mxu0 0.0
    %1428 = vmatprep.subr.mxu0 0.0
    %1429 = vmatpush1.msra.mxu0 0.0
    %1430 = vmatprep.subr.mxu0 0.0
    %1431 = vmatpush1.msra.mxu0 0.0
    %1432 = vmatprep.subr.mxu0 0.0
    %1433 = vmatpush1.msra.mxu0 0.0
    %1434 = vmatprep.subr.mxu0 0.0
    %1435 = vmatpush1.msra.mxu0 0.0
    %1436 = vmatprep.subr.mxu0 0.0
    %1437 = vmatpush1.msra.mxu0 0.0
    %1438 = vmatprep.subr.mxu0 0.0
    %1439 = vmatpush1.msra.mxu0 0.0
    %1440 = vmatprep.subr.mxu0 0.0
    %1441 = vmatpush1.msra.mxu0 0.0
    %1442 = vmatprep.subr.mxu0 0.0
    %1443 = vmatpush1.msra.mxu0 0.0
    %1444 = vmatprep.subr.mxu0 0.0
    %1445 = vmatpush1.msra.mxu0 0.0
    %1446 = vmatprep.subr.mxu0 0.0
    %v1447 = vand.u32 %v1001, 4294901760
    %1448 = vmatpush1.msra.mxu0 %v1447
    %1449 = vmatprep.subr.mxu0 0.0
    %v1450 = vand.u32 %v1000, 4294901760
    %1451 = vmatpush1.msra.mxu0 %v1450
    %1452 = vmatprep.subr.mxu0 0.0
    %v1453 = vand.u32 %v999, 4294901760
    %1454 = vmatpush1.msra.mxu0 %v1453
    %1455 = vmatprep.subr.mxu0 0.0
    %v1456 = vand.u32 %v998, 4294901760
    %1457 = vmatpush1.msra.mxu0 %v1456
    %1458 = vmatprep.subr.mxu0 0.0
    %1459 = vmatpush2.msra.mxu0 0.0
    %1460 = vmatprep.subr.mxu0 0.0
    %1461 = vmatpush2.msra.mxu0 0.0
    %1462 = vmatprep.subr.mxu0 0.0
    %1463 = vmatpush2.msra.mxu0 0.0
    %1464 = vmatprep.subr.mxu0 0.0
    %1465 = vmatpush2.msra.mxu0 0.0
    %1466 = vmatprep.subr.mxu0 0.0
    %1467 = vmatpush2.msra.mxu0 0.0
    %1468 = vmatprep.subr.mxu0 0.0
    %1469 = vmatpush2.msra.mxu0 0.0
    %1470 = vmatprep.subr.mxu0 0.0
    %1471 = vmatpush2.msra.mxu0 0.0
    %1472 = vmatprep.subr.mxu0 0.0
    %1473 = vmatpush2.msra.mxu0 0.0
    %1474 = vmatprep.subr.mxu0 0.0
    %1475 = vmatpush2.msra.mxu0 0.0
    %1476 = vmatprep.subr.mxu0 0.0
    %1477 = vmatpush2.msra.mxu0 0.0
    %1478 = vmatprep.subr.mxu0 0.0
    %1479 = vmatpush2.msra.mxu0 0.0
    %1480 = vmatprep.subr.mxu0 0.0
    %1481 = vmatpush2.msra.mxu0 0.0
    %1482 = vmatprep.subr.mxu0 0.0
    %1483 = vmatpush2.msra.mxu0 0.0
    %1484 = vmatprep.subr.mxu0 0.0
    %1485 = vmatpush2.msra.mxu0 0.0
    %1486 = vmatprep.subr.mxu0 0.0
    %1487 = vmatpush2.msra.mxu0 0.0
    %1488 = vmatprep.subr.mxu0 0.0
    %1489 = vmatpush2.msra.mxu0 0.0
    %1490 = vmatprep.mubr.f32.mxu0 0.0
    %v1491 = vand.u32 %v1010, 4294901760
    %1492 = vmatmul.mubr.f32.gmra.mxu0 %v1491
    %v1493 = vpop.f32.mrf.mxu0
    %v1494 = vadd.f32 %v1419, %v1493
    %v1495 = vpop.f32.mrf.mxu0
    %1496 = vdwg.mxu0
    %v1497 = vld [vmem:[#allocation2] sm:$0x1]
    %vm1498 = vcmask 130048
    %v1499 = vsel %vm1498, %v1494, 0.0
    %v1500 = vrot.slane %v1499, 4
    %v1501 = vadd.f32 %v1499, %v1500
    %v1502 = vrot.slane %v1501, 2
    %v1503 = vadd.f32 %v1501, %v1502
    %v1504 = vrot.slane %v1503, 1
    %v1505 = vadd.f32 %v1503, %v1504
    %v1506 = vadd.f32 %v1497, %v1505
    %vm1507 = vcmask 122880
    %1508 = vst.msk [vmem:[#allocation2] sm:$0x1] %vm1507, %v1506
    %v1509 = vld [vmem:[#allocation4] sm:$0x1]
    %v1510 = vmul.f32 %v1494, %v1494
    %v1511 = vsel %vm1498, %v1510, 0.0
    %v1512 = vrot.slane %v1511, 4
    %v1513 = vadd.f32 %v1511, %v1512
    %v1514 = vrot.slane %v1513, 2
    %v1515 = vadd.f32 %v1513, %v1514
    %v1516 = vrot.slane %v1515, 1
    %v1517 = vadd.f32 %v1515, %v1516
    %v1518 = vadd.f32 %v1509, %v1517
    %1519 = vst.msk [vmem:[#allocation4] sm:$0x1] %vm1507, %v1518
    // Predicated region
    $region34: #{tpu_custom_call.1} parent=1 // pred_check
      _
    $region35: #{tpu_custom_call.1} parent=1 // pred_check_branch
      %1521 = sbr.rel (0) target = $region37
    $region36: #{tpu_custom_call.1} parent=1 // pred_region
      %s1523 = ssub.s32 16, 16
      %1524 = vsyncadd [#allocation3], %s1523
      %s1526 = sshll.u32 [#allocation2], 4
      %s1527 = int_to_ptr.vmem [resolvable:$true] %s1526
      %1529 = dma.vmem_to_hbm [thread:$0]  %s1527, 16, %s7, [#allocation3]
    $region37: #{tpu_custom_call.1} parent=1 // pred_fallthru
      _
    // Predicated region
    $region38: #{tpu_custom_call.1} parent=1 // pred_check
      _
    $region39: #{tpu_custom_call.1} parent=1 // pred_check_branch
      %1531 = sbr.rel (0) target = $region41
    $region40: #{tpu_custom_call.1} parent=1 // pred_region
      %s1533 = ssub.s32 16, 16
      %1534 = vsyncadd [#allocation5], %s1533
      %s1536 = sshll.u32 [#allocation4], 4
      %s1537 = int_to_ptr.vmem [resolvable:$true] %s1536
      %1539 = dma.vmem_to_hbm [thread:$0]  %s1537, 16, %s8, [#allocation5]
    $region41: #{tpu_custom_call.1} parent=1 // pred_fallthru
      _
    // Predicated region
    $region42: #{tpu_custom_call.1} parent=1 // pred_check
      _
    $region43: #{tpu_custom_call.1} parent=1 // pred_check_branch
      %1541 = sbr.rel (0) target = $region45
    $region44: #{tpu_custom_call.1} parent=1 // pred_region
      %1542 = dma.done [#allocation3], 16
    $region45: #{tpu_custom_call.1} parent=1 // pred_fallthru
      _
    // Predicated region
    $region46: #{tpu_custom_call.1} parent=1 // pred_check
      _
    $region47: #{tpu_custom_call.1} parent=1 // pred_check_branch
      %1544 = sbr.rel (0) target = $region49
    $region48: #{tpu_custom_call.1} parent=1 // pred_region
      %1545 = dma.done [#allocation5], 16
    $region49: #{tpu_custom_call.1} parent=1 // pred_fallthru
      _
    %1546 = vsyncpa [#allocation3], 1
    %1547 = vsyncpa [#allocation5], 1

</llo_original>
